<compile_context>
chip_gen: v7x
topology: tpu7x:2x2x1
jax: 0.10.0
libtpu: 0.0.40
codegen_flags: <defaults>
</compile_context>

<pallas_src>
import jax
import jax.numpy as jnp
from jax.experimental import pallas as pl
from jax.experimental.pallas import tpu as pltpu

LASER_DIM = 128   # laser scan features (small synthetic size)
POSE_DIM = 8      # odometry / pose features
H_LASER = 64
H_POSE = 32
H_JOINT = 64
CONTROL_DIM = 2

H_CAT = H_LASER + H_POSE     # 96: width of the fused [laser-branch || pose-branch] slab
OUT_PAD = 128                # lane-dense padded output width (VMEM-only)


def _round_up(x, m):
    return ((x + m - 1) // m) * m


def imitation_kernel(odom_ref, laser_ref,
                     wa_l_ref, wa_p_ref, ba_ref,
                     wb_ref, bb_ref,
                     wj_ref, bj_ref,
                     wo_ref, bo_ref,
                     out_ref):
    # f32 activation tiles cast to bf16 on the VPU (free; avoids a separate XLA cast pass).
    laser = laser_ref[...].astype(jnp.bfloat16)   # (TM, 128)
    pose = odom_ref[...].astype(jnp.bfloat16)     # (TM, 8)

    # Layer A (both branches' first layers fused into one 96-wide slab):
    #   [h1 || hp] = relu(laser @ [W1 | 0] + pose @ [0 | W3] + [b1 || b3])
    ha = (jnp.dot(laser, wa_l_ref[...], preferred_element_type=jnp.float32)
          + jnp.dot(pose, wa_p_ref[...], preferred_element_type=jnp.float32)
          + ba_ref[...])
    ha = jnp.maximum(ha, 0.0).astype(jnp.bfloat16)

    # Layer B (second laser layer + identity pass-through for hp; exact since hp >= 0):
    #   [h2 || hp] = relu([h1 || hp] @ blockdiag(W2, I) + [b2 || 0])
    hb = jnp.dot(ha, wb_ref[...], preferred_element_type=jnp.float32) + bb_ref[...]
    hb = jnp.maximum(hb, 0.0).astype(jnp.bfloat16)

    # Joint head: single (96, 64) weight on the concatenated slab (== W4a/W4b split).
    hj = jnp.dot(hb, wj_ref[...], preferred_element_type=jnp.float32) + bj_ref[...]
    hj = jnp.maximum(hj, 0.0).astype(jnp.bfloat16)

    # Output matmul stays lane-dense (128 cols) only as an in-VMEM result; store just
    # the CONTROL_DIM real lanes to HBM (masked 2-lane vst per 8 rows -> negligible,
    # while the HBM writeback drops from 512 B/row to 8 B/row).
    acc = jnp.dot(hj, wo_ref[...], preferred_element_type=jnp.float32) + bo_ref[...]
    out_ref[...] = acc[:, :CONTROL_DIM]


def init_raw_params(key):
    """Deterministic synthetic parameters in PyTorch-like (in_features, out_features) layout."""
    ks = jax.random.split(key, 12)

    def lin(kw, kb, fan_in, fan_out):
        w = jax.random.normal(kw, (fan_in, fan_out), jnp.float32) * (1.0 / jnp.sqrt(fan_in))
        b = jax.random.normal(kb, (fan_out,), jnp.float32) * 0.1
        return w, b

    w1, b1 = lin(ks[0], ks[1], LASER_DIM, H_LASER)
    w2, b2 = lin(ks[2], ks[3], H_LASER, H_LASER)
    w3, b3 = lin(ks[4], ks[5], POSE_DIM, H_POSE)
    w4a, _ = lin(ks[6], ks[7], H_LASER, H_JOINT)     # laser half of the concat weight
    w4b, b4 = lin(ks[8], ks[9], H_POSE, H_JOINT)     # pose half of the concat weight
    w5, b5 = lin(ks[10], ks[11], H_JOINT, CONTROL_DIM)
    return (w1, b1, w2, b2, w3, b3, w4a, w4b, b4, w5, b5)


def pack_params(raw):
    """Fuse per-branch weights into MXU-friendly slabs; weights bf16, biases f32."""
    (w1, b1, w2, b2, w3, b3, w4a, w4b, b4, w5, b5) = raw
    f32, bf16 = jnp.float32, jnp.bfloat16

    # Layer A: laser part [W1 | 0] (128,96), pose part [0 | W3] (8,96), bias [b1 || b3].
    wa_l = jnp.zeros((LASER_DIM, H_CAT), f32).at[:, :H_LASER].set(w1)
    wa_p = jnp.zeros((POSE_DIM, H_CAT), f32).at[:, H_LASER:].set(w3)
    ba = jnp.concatenate([b1, b3]).reshape(1, H_CAT)

    # Layer B: blockdiag(W2, I_{H_POSE}), bias [b2 || 0].  (Exactness relies on hp >= 0.)
    wb = jnp.zeros((H_CAT, H_CAT), f32)
    wb = wb.at[:H_LASER, :H_LASER].set(w2)
    wb = wb.at[H_LASER:, H_LASER:].set(jnp.eye(H_POSE, dtype=f32))
    bb = jnp.concatenate([b2, jnp.zeros((H_POSE,), f32)]).reshape(1, H_CAT)

    # Joint head: (96, 64) == vstack(W4a, W4b) applied to [h2 || hp].
    wj = jnp.concatenate([w4a, w4b], axis=0)
    bj = b4.reshape(1, H_JOINT)

    # Output layer zero-padded to 128 lanes (used only inside VMEM; HBM out is 2 cols).
    wo = jnp.zeros((H_JOINT, OUT_PAD), f32).at[:, :CONTROL_DIM].set(w5)
    bo = jnp.zeros((1, OUT_PAD), f32).at[:, :CONTROL_DIM].set(b5.reshape(1, CONTROL_DIM))

    return (wa_l.astype(bf16), wa_p.astype(bf16), ba,
            wb.astype(bf16), bb,
            wj.astype(bf16), bj,
            wo.astype(bf16), bo)


def imitation_forward(odom_input, laser_scan, packed_params, *, tm_max=1024):
    B = odom_input.shape[0]

    # Derive the tile from the batch (not the batch from the tile):
    #  * >= 2 grid steps so dimension_semantics=("parallel",) shards across both v7x TCs,
    #  * tm a multiple of 16 (dense bf16 sublane packing), capped at tm_max,
    #  * tail padding bounded by ~16 * n_steps rows (never ~2x the batch).
    n_steps = max(2, pl.cdiv(B, tm_max))
    tm = _round_up(pl.cdiv(B, n_steps), 16)
    b_pad = n_steps * tm
    if b_pad != B:
        odom_input = jnp.pad(odom_input, ((0, b_pad - B), (0, 0)))
        laser_scan = jnp.pad(laser_scan, ((0, b_pad - B), (0, 0)))

    grid = (n_steps,)

    def batch_spec(cols):
        return pl.BlockSpec((tm, cols), lambda i: (i, 0))

    def const_spec(shape):
        nd = len(shape)
        return pl.BlockSpec(shape, lambda i, _nd=nd: (0,) * _nd)

    in_specs = [batch_spec(POSE_DIM), batch_spec(LASER_DIM)]
    in_specs += [const_spec(p.shape) for p in packed_params]

    flops = 2 * b_pad * (LASER_DIM * H_CAT + POSE_DIM * H_CAT
                         + H_CAT * H_CAT + H_CAT * H_JOINT + H_JOINT * OUT_PAD)
    bytes_accessed = (int(laser_scan.size) * 4 + int(odom_input.size) * 4
                      + sum(int(p.size) * p.dtype.itemsize for p in packed_params)
                      + b_pad * CONTROL_DIM * 4)

    out = pl.pallas_call(
        imitation_kernel,
        out_shape=jax.ShapeDtypeStruct((b_pad, CONTROL_DIM), jnp.float32),
        grid_spec=pltpu.PrefetchScalarGridSpec(
            num_scalar_prefetch=0,
            grid=grid,
            in_specs=in_specs,
            out_specs=pl.BlockSpec((tm, CONTROL_DIM), lambda i: (i, 0)),
        ),
        compiler_params=pltpu.CompilerParams(
            dimension_semantics=("parallel",)),
        cost_estimate=pl.CostEstimate(
            flops=flops, transcendentals=0, bytes_accessed=bytes_accessed),
    )(odom_input, laser_scan, *packed_params)

    return out if b_pad == B else out[:B]


def reference_forward(odom_input, laser_scan, raw_params):
    """Unfused reference mirroring the kernel's bf16-operand / f32-accumulate numerics."""
    (w1, b1, w2, b2, w3, b3, w4a, w4b, b4, w5, b5) = raw_params

    def dot(a, b):
        return jnp.dot(a.astype(jnp.bfloat16), b.astype(jnp.bfloat16),
                       preferred_element_type=jnp.float32)

    h1 = jnp.maximum(dot(laser_scan, w1) + b1, 0.0)
    h2 = jnp.maximum(dot(h1, w2) + b2, 0.0)
    hp = jnp.maximum(dot(odom_input, w3) + b3, 0.0)
    h4 = jnp.maximum(dot(h2, w4a) + dot(hp, w4b) + b4, 0.0)
    return dot(h4, w5) + b5


if __name__ == "__main__":
    key = jax.random.PRNGKey(0)
    k_odom, k_laser, k_params = jax.random.split(key, 3)

    B = 512   # two 256-row grid steps -> exercises the pipelined, tiled path
    odom_input = jax.random.normal(k_odom, (B, POSE_DIM), jnp.float32)
    laser_scan = jax.random.normal(k_laser, (B, LASER_DIM), jnp.float32)

    raw_params = init_raw_params(k_params)
    packed_params = pack_params(raw_params)

    control_predict = imitation_forward(odom_input, laser_scan, packed_params)
    control_predict = jax.block_until_ready(control_predict)

    ref = reference_forward(odom_input, laser_scan, raw_params)
    assert control_predict.shape == (B, CONTROL_DIM)
    err = float(jnp.max(jnp.abs(control_predict - ref)))
    assert jnp.allclose(control_predict, ref, atol=2e-3, rtol=2e-3), err

    print("KERNEL_OK")
</pallas_src>

<mosaic_0001>
module attributes {stable_mosaic.version = 11 : i64} {
  func.func @imitation_kernel(%arg0: i32, %arg1: memref<256x8xf32, #tpu.memory_space<vmem>>, %arg2: memref<256x128xf32, #tpu.memory_space<vmem>>, %arg3: memref<128x96xbf16, #tpu.memory_space<vmem>>, %arg4: memref<8x96xbf16, #tpu.memory_space<vmem>>, %arg5: memref<1x96xf32, #tpu.memory_space<vmem>>, %arg6: memref<96x96xbf16, #tpu.memory_space<vmem>>, %arg7: memref<1x96xf32, #tpu.memory_space<vmem>>, %arg8: memref<96x64xbf16, #tpu.memory_space<vmem>>, %arg9: memref<1x64xf32, #tpu.memory_space<vmem>>, %arg10: memref<64x128xbf16, #tpu.memory_space<vmem>>, %arg11: memref<1x128xf32, #tpu.memory_space<vmem>>, %arg12: memref<256x2xf32, #tpu.memory_space<vmem>>) attributes {dimension_semantics = [#tpu.dimension_semantics<parallel>], iteration_bounds = array<i64: 2>, scalar_prefetch = 0 : i64, scratch_operands = 0 : i64, tpu.core_type = #tpu.core_type<tc>, window_params = [{transform_indices = @transform_0, window_bounds = array<i64: 256, 8>}, {transform_indices = @transform_1, window_bounds = array<i64: 256, 128>}, {pipeline_mode = #tpu.pipeline_mode<synchronous>, transform_indices = @transform_2, window_bounds = array<i64: 128, 96>}, {pipeline_mode = #tpu.pipeline_mode<synchronous>, transform_indices = @transform_3, window_bounds = array<i64: 8, 96>}, {pipeline_mode = #tpu.pipeline_mode<synchronous>, transform_indices = @transform_4, window_bounds = array<i64: 1, 96>}, {pipeline_mode = #tpu.pipeline_mode<synchronous>, transform_indices = @transform_5, window_bounds = array<i64: 96, 96>}, {pipeline_mode = #tpu.pipeline_mode<synchronous>, transform_indices = @transform_6, window_bounds = array<i64: 1, 96>}, {pipeline_mode = #tpu.pipeline_mode<synchronous>, transform_indices = @transform_7, window_bounds = array<i64: 96, 64>}, {pipeline_mode = #tpu.pipeline_mode<synchronous>, transform_indices = @transform_8, window_bounds = array<i64: 1, 64>}, {pipeline_mode = #tpu.pipeline_mode<synchronous>, transform_indices = @transform_9, window_bounds = array<i64: 64, 128>}, {pipeline_mode = #tpu.pipeline_mode<synchronous>, transform_indices = @transform_10, window_bounds = array<i64: 1, 128>}, {transform_indices = @transform_11, window_bounds = array<i64: 256, 2>}]} {
    %c0 = arith.constant 0 : index
    %c0_0 = arith.constant 0 : index
    %0 = vector.load %arg2[%c0, %c0_0] : memref<256x128xf32, #tpu.memory_space<vmem>>, vector<256x128xf32>
    %1 = arith.truncf %0 : vector<256x128xf32> to vector<256x128xbf16>
    %c0_1 = arith.constant 0 : index
    %c0_2 = arith.constant 0 : index
    %2 = vector.load %arg1[%c0_1, %c0_2] : memref<256x8xf32, #tpu.memory_space<vmem>>, vector<256x8xf32>
    %3 = arith.truncf %2 : vector<256x8xf32> to vector<256x8xbf16>
    %c0_3 = arith.constant 0 : index
    %c0_4 = arith.constant 0 : index
    %4 = vector.load %arg3[%c0_3, %c0_4] : memref<128x96xbf16, #tpu.memory_space<vmem>>, vector<128x96xbf16>
    %cst = arith.constant dense<0.000000e+00> : vector<256x96xf32>
    %5 = tpu.matmul %1, %4, %cst {dimension_numbers = #tpu.dot_dimension_numbers<[1], [0], [0], [1], [0, 0, 1, 1], [], []>} : vector<256x128xbf16>, vector<128x96xbf16>, vector<256x96xf32> -> vector<256x96xf32>
    %c0_5 = arith.constant 0 : index
    %c0_6 = arith.constant 0 : index
    %6 = vector.load %arg4[%c0_5, %c0_6] : memref<8x96xbf16, #tpu.memory_space<vmem>>, vector<8x96xbf16>
    %cst_7 = arith.constant dense<0.000000e+00> : vector<256x96xf32>
    %7 = tpu.matmul %3, %6, %cst_7 {dimension_numbers = #tpu.dot_dimension_numbers<[1], [0], [0], [1], [0, 0, 1, 1], [], []>} : vector<256x8xbf16>, vector<8x96xbf16>, vector<256x96xf32> -> vector<256x96xf32>
    %8 = arith.addf %5, %7 : vector<256x96xf32>
    %c0_8 = arith.constant 0 : index
    %c0_9 = arith.constant 0 : index
    %9 = vector.load %arg5[%c0_8, %c0_9] : memref<1x96xf32, #tpu.memory_space<vmem>>, vector<1x96xf32>
    %10 = vector.broadcast %9 : vector<1x96xf32> to vector<256x96xf32>
    %11 = arith.addf %8, %10 : vector<256x96xf32>
    %cst_10 = arith.constant 0.000000e+00 : f32
    %12 = vector.broadcast %cst_10 : f32 to vector<256x96xf32>
    %13 = arith.maximumf %11, %12 : vector<256x96xf32>
    %14 = arith.truncf %13 : vector<256x96xf32> to vector<256x96xbf16>
    %c0_11 = arith.constant 0 : index
    %c0_12 = arith.constant 0 : index
    %15 = vector.load %arg6[%c0_11, %c0_12] : memref<96x96xbf16, #tpu.memory_space<vmem>>, vector<96x96xbf16>
    %cst_13 = arith.constant dense<0.000000e+00> : vector<256x96xf32>
    %16 = tpu.matmul %14, %15, %cst_13 {dimension_numbers = #tpu.dot_dimension_numbers<[1], [0], [0], [1], [0, 0, 1, 1], [], []>} : vector<256x96xbf16>, vector<96x96xbf16>, vector<256x96xf32> -> vector<256x96xf32>
    %c0_14 = arith.constant 0 : index
    %c0_15 = arith.constant 0 : index
    %17 = vector.load %arg7[%c0_14, %c0_15] : memref<1x96xf32, #tpu.memory_space<vmem>>, vector<1x96xf32>
    %18 = vector.broadcast %17 : vector<1x96xf32> to vector<256x96xf32>
    %19 = arith.addf %16, %18 : vector<256x96xf32>
    %cst_16 = arith.constant 0.000000e+00 : f32
    %20 = vector.broadcast %cst_16 : f32 to vector<256x96xf32>
    %21 = arith.maximumf %19, %20 : vector<256x96xf32>
    %22 = arith.truncf %21 : vector<256x96xf32> to vector<256x96xbf16>
    %c0_17 = arith.constant 0 : index
    %c0_18 = arith.constant 0 : index
    %23 = vector.load %arg8[%c0_17, %c0_18] : memref<96x64xbf16, #tpu.memory_space<vmem>>, vector<96x64xbf16>
    %cst_19 = arith.constant dense<0.000000e+00> : vector<256x64xf32>
    %24 = tpu.matmul %22, %23, %cst_19 {dimension_numbers = #tpu.dot_dimension_numbers<[1], [0], [0], [1], [0, 0, 1, 1], [], []>} : vector<256x96xbf16>, vector<96x64xbf16>, vector<256x64xf32> -> vector<256x64xf32>
    %c0_20 = arith.constant 0 : index
    %c0_21 = arith.constant 0 : index
    %25 = vector.load %arg9[%c0_20, %c0_21] : memref<1x64xf32, #tpu.memory_space<vmem>>, vector<1x64xf32>
    %26 = vector.broadcast %25 : vector<1x64xf32> to vector<256x64xf32>
    %27 = arith.addf %24, %26 : vector<256x64xf32>
    %cst_22 = arith.constant 0.000000e+00 : f32
    %28 = vector.broadcast %cst_22 : f32 to vector<256x64xf32>
    %29 = arith.maximumf %27, %28 : vector<256x64xf32>
    %30 = arith.truncf %29 : vector<256x64xf32> to vector<256x64xbf16>
    %c0_23 = arith.constant 0 : index
    %c0_24 = arith.constant 0 : index
    %31 = vector.load %arg10[%c0_23, %c0_24] : memref<64x128xbf16, #tpu.memory_space<vmem>>, vector<64x128xbf16>
    %cst_25 = arith.constant dense<0.000000e+00> : vector<256x128xf32>
    %32 = tpu.matmul %30, %31, %cst_25 {dimension_numbers = #tpu.dot_dimension_numbers<[1], [0], [0], [1], [0, 0, 1, 1], [], []>} : vector<256x64xbf16>, vector<64x128xbf16>, vector<256x128xf32> -> vector<256x128xf32>
    %c0_26 = arith.constant 0 : index
    %c0_27 = arith.constant 0 : index
    %33 = vector.load %arg11[%c0_26, %c0_27] : memref<1x128xf32, #tpu.memory_space<vmem>>, vector<1x128xf32>
    %34 = vector.broadcast %33 : vector<1x128xf32> to vector<256x128xf32>
    %35 = arith.addf %32, %34 : vector<256x128xf32>
    %36 = vector.extract_strided_slice %35 {offsets = [0, 0], sizes = [256, 2], strides = [1, 1]} : vector<256x128xf32> to vector<256x2xf32>
    %c0_28 = arith.constant 0 : index
    %c0_29 = arith.constant 0 : index
    %37 = vector.load %arg12[%c0_28, %c0_29] : memref<256x2xf32, #tpu.memory_space<vmem>>, vector<256x2xf32>
    tpu.vector_store %arg12[%c0_28, %c0_29], %36 {strides = array<i32>} : memref<256x2xf32, #tpu.memory_space<vmem>>, vector<256x2xf32>,
    return
  }
  func.func @transform_0(%arg0: i32) -> (i32, i32) {
    %c0_i32 = arith.constant 0 : i32
    %c0_i32_0 = arith.constant 0 : i32
    return %arg0, %c0_i32 : i32, i32
  }
  func.func @transform_1(%arg0: i32) -> (i32, i32) {
    %c0_i32 = arith.constant 0 : i32
    %c0_i32_0 = arith.constant 0 : i32
    return %arg0, %c0_i32 : i32, i32
  }
  func.func @transform_2(%arg0: i32) -> (i32, i32) {
    %c0_i32 = arith.constant 0 : i32
    %c0_i32_0 = arith.constant 0 : i32
    %c0_i32_1 = arith.constant 0 : i32
    return %c0_i32, %c0_i32_0 : i32, i32
  }
  func.func @transform_3(%arg0: i32) -> (i32, i32) {
    %c0_i32 = arith.constant 0 : i32
    %c0_i32_0 = arith.constant 0 : i32
    %c0_i32_1 = arith.constant 0 : i32
    return %c0_i32, %c0_i32_0 : i32, i32
  }
  func.func @transform_4(%arg0: i32) -> (i32, i32) {
    %c0_i32 = arith.constant 0 : i32
    %c0_i32_0 = arith.constant 0 : i32
    %c0_i32_1 = arith.constant 0 : i32
    return %c0_i32, %c0_i32_0 : i32, i32
  }
  func.func @transform_5(%arg0: i32) -> (i32, i32) {
    %c0_i32 = arith.constant 0 : i32
    %c0_i32_0 = arith.constant 0 : i32
    %c0_i32_1 = arith.constant 0 : i32
    return %c0_i32, %c0_i32_0 : i32, i32
  }
  func.func @transform_6(%arg0: i32) -> (i32, i32) {
    %c0_i32 = arith.constant 0 : i32
    %c0_i32_0 = arith.constant 0 : i32
    %c0_i32_1 = arith.constant 0 : i32
    return %c0_i32, %c0_i32_0 : i32, i32
  }
  func.func @transform_7(%arg0: i32) -> (i32, i32) {
    %c0_i32 = arith.constant 0 : i32
    %c0_i32_0 = arith.constant 0 : i32
    %c0_i32_1 = arith.constant 0 : i32
    return %c0_i32, %c0_i32_0 : i32, i32
  }
  func.func @transform_8(%arg0: i32) -> (i32, i32) {
    %c0_i32 = arith.constant 0 : i32
    %c0_i32_0 = arith.constant 0 : i32
    %c0_i32_1 = arith.constant 0 : i32
    return %c0_i32, %c0_i32_0 : i32, i32
  }
  func.func @transform_9(%arg0: i32) -> (i32, i32) {
    %c0_i32 = arith.constant 0 : i32
    %c0_i32_0 = arith.constant 0 : i32
    %c0_i32_1 = arith.constant 0 : i32
    return %c0_i32, %c0_i32_0 : i32, i32
  }
  func.func @transform_10(%arg0: i32) -> (i32, i32) {
    %c0_i32 = arith.constant 0 : i32
    %c0_i32_0 = arith.constant 0 : i32
    %c0_i32_1 = arith.constant 0 : i32
    return %c0_i32, %c0_i32_0 : i32, i32
  }
  func.func @transform_11(%arg0: i32) -> (i32, i32) {
    %c0_i32 = arith.constant 0 : i32
    %c0_i32_0 = arith.constant 0 : i32
    return %arg0, %c0_i32 : i32, i32
  }
}

</mosaic_0001>

<llo_original>
// kernel: tpu_custom_call.1
$region0: #{tpu_custom_call.1}
  #allocation0 [shape = 'u32[]', space=smem, size = 0x4, offset = 0x4, fixed_abs, tag = 'smem constant byte address 0x4 - core index']
  #allocation1 [shape = 'u32[144,128]{1,0:T(1,128)}', space=vmem, size = 0x12000, scoped, tag = 'internal scratch']
  %s0 = inlined_call_operand.vmem [shape: f32[512,8], index: 0, kind: input, shape index: {}]
  %s1 = inlined_call_operand.vmem [shape: f32[512,128], index: 1, kind: input, shape index: {}]
  %s2 = inlined_call_operand.vmem [shape: bf16[128,96], index: 2, kind: input, shape index: {}]
  %s3 = inlined_call_operand.vmem [shape: bf16[8,96], index: 3, kind: input, shape index: {}]
  %s4 = inlined_call_operand.vmem [shape: f32[1,96], index: 4, kind: input, shape index: {}]
  %s5 = inlined_call_operand.vmem [shape: bf16[96,96], index: 5, kind: input, shape index: {}]
  %s6 = inlined_call_operand.vmem [shape: f32[1,96], index: 6, kind: input, shape index: {}]
  %s7 = inlined_call_operand.vmem [shape: bf16[96,64], index: 7, kind: input, shape index: {}]
  %s8 = inlined_call_operand.vmem [shape: f32[1,64], index: 8, kind: input, shape index: {}]
  %s9 = inlined_call_operand.vmem [shape: bf16[64,128], index: 9, kind: input, shape index: {}]
  %s10 = inlined_call_operand.vmem [shape: f32[1,128], index: 10, kind: input, shape index: {}]
  %s11 = inlined_call_operand.vmem [shape: f32[512,2], index: 11, kind: output, shape index: {}]
  %s12 = sld [smem:[#allocation0]]
  $region77: #{tpu_custom_call.1} parent=0
    _
  %s14 = ssub.s32 1, %s12
  %s15 = scalar_select 0, %s14, %s12
  loop: start=0, step=1, limit=4
  $region2: #{tpu_custom_call.1} parent=0 // loop_pre_header
    _
  $region3: #{tpu_custom_call.1} parent=0 // loop_header
    %s17 = sphi 0, %s21
    %p18 = scmp.ge.s32.totalorder %s17, 4
    %s27 = sphi 0, %s29
    %s30 = sphi 0, %s27
    %s31 = sphi 0, %s30
    %s47 = sphi 0, %s31
    %s53 = sphi 0, %s55
    %s56 = sphi 0, %s53
    %s57 = sphi 0, %s56
    %s73 = sphi 0, %s57
    %s77 = sphi 0, %s77
    %s79 = sphi 0, %s77
    %s80 = sphi 0, %s79
    %s94 = sphi 0, %s80
    %s98 = sphi 0, %s98
    %s100 = sphi 0, %s98
    %s101 = sphi 0, %s100
    %s115 = sphi 0, %s101
    %s119 = sphi 0, %s119
    %s121 = sphi 0, %s119
    %s122 = sphi 0, %s121
    %s136 = sphi 0, %s122
    %s140 = sphi 0, %s140
    %s142 = sphi 0, %s140
    %s143 = sphi 0, %s142
    %s157 = sphi 0, %s143
    %s161 = sphi 0, %s161
    %s163 = sphi 0, %s161
    %s164 = sphi 0, %s163
    %s178 = sphi 0, %s164
    %s182 = sphi 0, %s182
    %s184 = sphi 0, %s182
    %s185 = sphi 0, %s184
    %s199 = sphi 0, %s185
    %s203 = sphi 0, %s203
    %s205 = sphi 0, %s203
    %s206 = sphi 0, %s205
    %s220 = sphi 0, %s206
    %s224 = sphi 0, %s224
    %s226 = sphi 0, %s224
    %s227 = sphi 0, %s226
    %s241 = sphi 0, %s227
    %s245 = sphi 0, %s245
    %s247 = sphi 0, %s245
    %s248 = sphi 0, %s247
    %s262 = sphi 0, %s248
    %s268 = sphi 0, %s270
    %s271 = sphi 0, %s268
    %s272 = sphi 0, %s271
    %s288 = sphi 0, %s272
  $region4: #{tpu_custom_call.1} parent=0 // loop_header_branch
    %20 = sbr.rel (%p18) target = $region8
  $region5: #{tpu_custom_call.1} parent=0 // loop_body
    %s22 = ssub.s32 %s17, 1
    %s23 = ssub.s32 %s17, 2
    %s24 = sadd.s32 %s17, 1
    %s25 = ssub.s32 %s17, %s24
    %p26 = scmp.eq.s32.totalorder %s25, 0
    %s28 = sadd.s32 %s27, 1
    %s29 = scalar_select %p26, %s27, %s28
    %p32 = pneg %p26
    %p33 = scmp.eq.s32.totalorder %s17, 1
    %p34 = por %p32, %p33
    %p35 = scmp.ne.s32.totalorder %s27, %s30
    %p36 = scmp.eq.s32.totalorder %s17, 0
    %p37 = por %p35, %p36
    %p38 = scmp.ne.s32.totalorder %s27, %s30
    %p39 = scmp.eq.s32.totalorder %s22, 1
    %p40 = por %p38, %p39
    %p41 = scmp.ne.s32.totalorder %s30, %s31
    %p42 = scmp.eq.s32.totalorder %s22, 0
    %p43 = por %p41, %p42
    %p44 = scmp.ne.s32.totalorder %s30, %s31
    %p45 = scmp.eq.s32.totalorder %s23, 1
    %p46 = por %p44, %p45
    %p48 = scmp.ne.s32.totalorder %s31, %s47
    %p49 = scmp.eq.s32.totalorder %s23, 0
    %p50 = por %p48, %p49
    %s51 = ssub.s32 %s17, %s24
    %p52 = scmp.eq.s32.totalorder %s51, 0
    %s54 = sadd.s32 %s53, 1
    %s55 = scalar_select %p52, %s53, %s54
    %p58 = pneg %p52
    %p59 = scmp.eq.s32.totalorder %s17, 1
    %p60 = por %p58, %p59
    %p61 = scmp.ne.s32.totalorder %s53, %s56
    %p62 = scmp.eq.s32.totalorder %s17, 0
    %p63 = por %p61, %p62
    %p64 = scmp.ne.s32.totalorder %s53, %s56
    %p65 = scmp.eq.s32.totalorder %s22, 1
    %p66 = por %p64, %p65
    %p67 = scmp.ne.s32.totalorder %s56, %s57
    %p68 = scmp.eq.s32.totalorder %s22, 0
    %p69 = por %p67, %p68
    %p70 = scmp.ne.s32.totalorder %s56, %s57
    %p71 = scmp.eq.s32.totalorder %s23, 1
    %p72 = por %p70, %p71
    %p74 = scmp.ne.s32.totalorder %s57, %s73
    %p75 = scmp.eq.s32.totalorder %s23, 0
    %p76 = por %p74, %p75
    %s78 = sadd.s32 %s77, 1
    %p81 = scmp.eq.s32.totalorder %s17, 1
    %p82 = scmp.ne.s32.totalorder %s77, %s79
    %p83 = scmp.eq.s32.totalorder %s17, 0
    %p84 = por %p82, %p83
    %p85 = scmp.ne.s32.totalorder %s77, %s79
    %p86 = scmp.eq.s32.totalorder %s22, 1
    %p87 = por %p85, %p86
    %p88 = scmp.ne.s32.totalorder %s79, %s80
    %p89 = scmp.eq.s32.totalorder %s22, 0
    %p90 = por %p88, %p89
    %p91 = scmp.ne.s32.totalorder %s79, %s80
    %p92 = scmp.eq.s32.totalorder %s23, 1
    %p93 = por %p91, %p92
    %p95 = scmp.ne.s32.totalorder %s80, %s94
    %p96 = scmp.eq.s32.totalorder %s23, 0
    %p97 = por %p95, %p96
    %s99 = sadd.s32 %s98, 1
    %p102 = scmp.eq.s32.totalorder %s17, 1
    %p103 = scmp.ne.s32.totalorder %s98, %s100
    %p104 = scmp.eq.s32.totalorder %s17, 0
    %p105 = por %p103, %p104
    %p106 = scmp.ne.s32.totalorder %s98, %s100
    %p107 = scmp.eq.s32.totalorder %s22, 1
    %p108 = por %p106, %p107
    %p109 = scmp.ne.s32.totalorder %s100, %s101
    %p110 = scmp.eq.s32.totalorder %s22, 0
    %p111 = por %p109, %p110
    %p112 = scmp.ne.s32.totalorder %s100, %s101
    %p113 = scmp.eq.s32.totalorder %s23, 1
    %p114 = por %p112, %p113
    %p116 = scmp.ne.s32.totalorder %s101, %s115
    %p117 = scmp.eq.s32.totalorder %s23, 0
    %p118 = por %p116, %p117
    %s120 = sadd.s32 %s119, 1
    %p123 = scmp.eq.s32.totalorder %s17, 1
    %p124 = scmp.ne.s32.totalorder %s119, %s121
    %p125 = scmp.eq.s32.totalorder %s17, 0
    %p126 = por %p124, %p125
    %p127 = scmp.ne.s32.totalorder %s119, %s121
    %p128 = scmp.eq.s32.totalorder %s22, 1
    %p129 = por %p127, %p128
    %p130 = scmp.ne.s32.totalorder %s121, %s122
    %p131 = scmp.eq.s32.totalorder %s22, 0
    %p132 = por %p130, %p131
    %p133 = scmp.ne.s32.totalorder %s121, %s122
    %p134 = scmp.eq.s32.totalorder %s23, 1
    %p135 = por %p133, %p134
    %p137 = scmp.ne.s32.totalorder %s122, %s136
    %p138 = scmp.eq.s32.totalorder %s23, 0
    %p139 = por %p137, %p138
    %s141 = sadd.s32 %s140, 1
    %p144 = scmp.eq.s32.totalorder %s17, 1
    %p145 = scmp.ne.s32.totalorder %s140, %s142
    %p146 = scmp.eq.s32.totalorder %s17, 0
    %p147 = por %p145, %p146
    %p148 = scmp.ne.s32.totalorder %s140, %s142
    %p149 = scmp.eq.s32.totalorder %s22, 1
    %p150 = por %p148, %p149
    %p151 = scmp.ne.s32.totalorder %s142, %s143
    %p152 = scmp.eq.s32.totalorder %s22, 0
    %p153 = por %p151, %p152
    %p154 = scmp.ne.s32.totalorder %s142, %s143
    %p155 = scmp.eq.s32.totalorder %s23, 1
    %p156 = por %p154, %p155
    %p158 = scmp.ne.s32.totalorder %s143, %s157
    %p159 = scmp.eq.s32.totalorder %s23, 0
    %p160 = por %p158, %p159
    %s162 = sadd.s32 %s161, 1
    %p165 = scmp.eq.s32.totalorder %s17, 1
    %p166 = scmp.ne.s32.totalorder %s161, %s163
    %p167 = scmp.eq.s32.totalorder %s17, 0
    %p168 = por %p166, %p167
    %p169 = scmp.ne.s32.totalorder %s161, %s163
    %p170 = scmp.eq.s32.totalorder %s22, 1
    %p171 = por %p169, %p170
    %p172 = scmp.ne.s32.totalorder %s163, %s164
    %p173 = scmp.eq.s32.totalorder %s22, 0
    %p174 = por %p172, %p173
    %p175 = scmp.ne.s32.totalorder %s163, %s164
    %p176 = scmp.eq.s32.totalorder %s23, 1
    %p177 = por %p175, %p176
    %p179 = scmp.ne.s32.totalorder %s164, %s178
    %p180 = scmp.eq.s32.totalorder %s23, 0
    %p181 = por %p179, %p180
    %s183 = sadd.s32 %s182, 1
    %p186 = scmp.eq.s32.totalorder %s17, 1
    %p187 = scmp.ne.s32.totalorder %s182, %s184
    %p188 = scmp.eq.s32.totalorder %s17, 0
    %p189 = por %p187, %p188
    %p190 = scmp.ne.s32.totalorder %s182, %s184
    %p191 = scmp.eq.s32.totalorder %s22, 1
    %p192 = por %p190, %p191
    %p193 = scmp.ne.s32.totalorder %s184, %s185
    %p194 = scmp.eq.s32.totalorder %s22, 0
    %p195 = por %p193, %p194
    %p196 = scmp.ne.s32.totalorder %s184, %s185
    %p197 = scmp.eq.s32.totalorder %s23, 1
    %p198 = por %p196, %p197
    %p200 = scmp.ne.s32.totalorder %s185, %s199
    %p201 = scmp.eq.s32.totalorder %s23, 0
    %p202 = por %p200, %p201
    %s204 = sadd.s32 %s203, 1
    %p207 = scmp.eq.s32.totalorder %s17, 1
    %p208 = scmp.ne.s32.totalorder %s203, %s205
    %p209 = scmp.eq.s32.totalorder %s17, 0
    %p210 = por %p208, %p209
    %p211 = scmp.ne.s32.totalorder %s203, %s205
    %p212 = scmp.eq.s32.totalorder %s22, 1
    %p213 = por %p211, %p212
    %p214 = scmp.ne.s32.totalorder %s205, %s206
    %p215 = scmp.eq.s32.totalorder %s22, 0
    %p216 = por %p214, %p215
    %p217 = scmp.ne.s32.totalorder %s205, %s206
    %p218 = scmp.eq.s32.totalorder %s23, 1
    %p219 = por %p217, %p218
    %p221 = scmp.ne.s32.totalorder %s206, %s220
    %p222 = scmp.eq.s32.totalorder %s23, 0
    %p223 = por %p221, %p222
    %s225 = sadd.s32 %s224, 1
    %p228 = scmp.eq.s32.totalorder %s17, 1
    %p229 = scmp.ne.s32.totalorder %s224, %s226
    %p230 = scmp.eq.s32.totalorder %s17, 0
    %p231 = por %p229, %p230
    %p232 = scmp.ne.s32.totalorder %s224, %s226
    %p233 = scmp.eq.s32.totalorder %s22, 1
    %p234 = por %p232, %p233
    %p235 = scmp.ne.s32.totalorder %s226, %s227
    %p236 = scmp.eq.s32.totalorder %s22, 0
    %p237 = por %p235, %p236
    %p238 = scmp.ne.s32.totalorder %s226, %s227
    %p239 = scmp.eq.s32.totalorder %s23, 1
    %p240 = por %p238, %p239
    %p242 = scmp.ne.s32.totalorder %s227, %s241
    %p243 = scmp.eq.s32.totalorder %s23, 0
    %p244 = por %p242, %p243
    %s246 = sadd.s32 %s245, 1
    %p249 = scmp.eq.s32.totalorder %s17, 1
    %p250 = scmp.ne.s32.totalorder %s245, %s247
    %p251 = scmp.eq.s32.totalorder %s17, 0
    %p252 = por %p250, %p251
    %p253 = scmp.ne.s32.totalorder %s245, %s247
    %p254 = scmp.eq.s32.totalorder %s22, 1
    %p255 = por %p253, %p254
    %p256 = scmp.ne.s32.totalorder %s247, %s248
    %p257 = scmp.eq.s32.totalorder %s22, 0
    %p258 = por %p256, %p257
    %p259 = scmp.ne.s32.totalorder %s247, %s248
    %p260 = scmp.eq.s32.totalorder %s23, 1
    %p261 = por %p259, %p260
    %p263 = scmp.ne.s32.totalorder %s248, %s262
    %p264 = scmp.eq.s32.totalorder %s23, 0
    %p265 = por %p263, %p264
    %s266 = ssub.s32 %s17, %s24
    %p267 = scmp.eq.s32.totalorder %s266, 0
    %s269 = sadd.s32 %s268, 1
    %s270 = scalar_select %p267, %s268, %s269
    %p273 = pneg %p267
    %p274 = scmp.eq.s32.totalorder %s17, 1
    %p275 = por %p273, %p274
    %p276 = scmp.ne.s32.totalorder %s268, %s271
    %p277 = scmp.eq.s32.totalorder %s17, 0
    %p278 = por %p276, %p277
    %p279 = scmp.ne.s32.totalorder %s268, %s271
    %p280 = scmp.eq.s32.totalorder %s22, 1
    %p281 = por %p279, %p280
    %p282 = scmp.ne.s32.totalorder %s271, %s272
    %p283 = scmp.eq.s32.totalorder %s22, 0
    %p284 = por %p282, %p283
    %p285 = scmp.ne.s32.totalorder %s271, %s272
    %p286 = scmp.eq.s32.totalorder %s23, 1
    %p287 = por %p285, %p286
    %p289 = scmp.ne.s32.totalorder %s272, %s288
    %p290 = scmp.eq.s32.totalorder %s23, 0
    %p291 = por %p289, %p290
    %p292 = scmp.le.s32.totalorder 1, %s17
    %p293 = scmp.lt.s32.totalorder %s17, 3
    %p294 = pnand %p292, %p293
    %p295 = pneg %p294
    // Predicated region
    $region9: #{tpu_custom_call.1} parent=5 // pred_check
      _
    $region10: #{tpu_custom_call.1} parent=5 // pred_check_branch
      %297 = sbr.rel (%p294) target = $region12
    $region11: #{tpu_custom_call.1} parent=5 // pred_region
      %s298 = ssub.s32 %s17, 1
      // Predicated region
      $region13: #{tpu_custom_call.1} parent=11 // pred_check
        %p299 = pneg %p90
      $region14: #{tpu_custom_call.1} parent=11 // pred_check_branch
        %301 = sbr.rel (%p299) target = $region16
      $region15: #{tpu_custom_call.1} parent=11 // pred_region
        _
      $region16: #{tpu_custom_call.1} parent=11 // pred_fallthru
        _
      // Predicated region
      $region17: #{tpu_custom_call.1} parent=11 // pred_check
        %p302 = pneg %p111
      $region18: #{tpu_custom_call.1} parent=11 // pred_check_branch
        %304 = sbr.rel (%p302) target = $region20
      $region19: #{tpu_custom_call.1} parent=11 // pred_region
        _
      $region20: #{tpu_custom_call.1} parent=11 // pred_fallthru
        _
      // Predicated region
      $region21: #{tpu_custom_call.1} parent=11 // pred_check
        %p305 = pneg %p132
      $region22: #{tpu_custom_call.1} parent=11 // pred_check_branch
        %307 = sbr.rel (%p305) target = $region24
      $region23: #{tpu_custom_call.1} parent=11 // pred_region
        _
      $region24: #{tpu_custom_call.1} parent=11 // pred_fallthru
        _
      // Predicated region
      $region25: #{tpu_custom_call.1} parent=11 // pred_check
        %p308 = pneg %p153
      $region26: #{tpu_custom_call.1} parent=11 // pred_check_branch
        %310 = sbr.rel (%p308) target = $region28
      $region27: #{tpu_custom_call.1} parent=11 // pred_region
        _
      $region28: #{tpu_custom_call.1} parent=11 // pred_fallthru
        _
      // Predicated region
      $region29: #{tpu_custom_call.1} parent=11 // pred_check
        %p311 = pneg %p174
      $region30: #{tpu_custom_call.1} parent=11 // pred_check_branch
        %313 = sbr.rel (%p311) target = $region32
      $region31: #{tpu_custom_call.1} parent=11 // pred_region
        _
      $region32: #{tpu_custom_call.1} parent=11 // pred_fallthru
        _
      // Predicated region
      $region33: #{tpu_custom_call.1} parent=11 // pred_check
        %p314 = pneg %p195
      $region34: #{tpu_custom_call.1} parent=11 // pred_check_branch
        %316 = sbr.rel (%p314) target = $region36
      $region35: #{tpu_custom_call.1} parent=11 // pred_region
        _
      $region36: #{tpu_custom_call.1} parent=11 // pred_fallthru
        _
      // Predicated region
      $region37: #{tpu_custom_call.1} parent=11 // pred_check
        %p317 = pneg %p216
      $region38: #{tpu_custom_call.1} parent=11 // pred_check_branch
        %319 = sbr.rel (%p317) target = $region40
      $region39: #{tpu_custom_call.1} parent=11 // pred_region
        _
      $region40: #{tpu_custom_call.1} parent=11 // pred_fallthru
        _
      // Predicated region
      $region41: #{tpu_custom_call.1} parent=11 // pred_check
        %p320 = pneg %p237
      $region42: #{tpu_custom_call.1} parent=11 // pred_check_branch
        %322 = sbr.rel (%p320) target = $region44
      $region43: #{tpu_custom_call.1} parent=11 // pred_region
        _
      $region44: #{tpu_custom_call.1} parent=11 // pred_fallthru
        _
      // Predicated region
      $region45: #{tpu_custom_call.1} parent=11 // pred_check
        %p323 = pneg %p258
      $region46: #{tpu_custom_call.1} parent=11 // pred_check_branch
        %325 = sbr.rel (%p323) target = $region48
      $region47: #{tpu_custom_call.1} parent=11 // pred_region
        _
      $region48: #{tpu_custom_call.1} parent=11 // pred_fallthru
        _
    $region12: #{tpu_custom_call.1} parent=5 // pred_fallthru
      _
    %p326 = scmp.lt.s32.totalorder %s17, 2
    // Predicated region
    $region49: #{tpu_custom_call.1} parent=5 // pred_check
      %p327 = pneg %p326
    $region50: #{tpu_custom_call.1} parent=5 // pred_check_branch
      %329 = sbr.rel (%p327) target = $region52
    $region51: #{tpu_custom_call.1} parent=5 // pred_region
      // Predicated region
      $region53: #{tpu_custom_call.1} parent=51 // pred_check
        %p330 = pneg %p37
      $region54: #{tpu_custom_call.1} parent=51 // pred_check_branch
        %332 = sbr.rel (%p330) target = $region56
      $region55: #{tpu_custom_call.1} parent=51 // pred_region
        %s333 = smul.u32 32, %s17
        %p334 = scmp.lt.s32.totalorder %s333, 63
        %s335 = scalar_select %p334, %s333, 63
        %s336 = smul.addr %s335, 8
        %s337 = scalar_lea.vmem %s0, %s336
        %s338 = smul.u32 32, %s17
      $region56: #{tpu_custom_call.1} parent=51 // pred_fallthru
        _
      // Predicated region
      $region57: #{tpu_custom_call.1} parent=51 // pred_check
        %p339 = pneg %p63
      $region58: #{tpu_custom_call.1} parent=51 // pred_check_branch
        %341 = sbr.rel (%p339) target = $region60
      $region59: #{tpu_custom_call.1} parent=51 // pred_region
        %s342 = smul.u32 32, %s17
        %p343 = scmp.lt.s32.totalorder %s342, 63
        %s344 = scalar_select %p343, %s342, 63
        %s345 = smul.addr %s344, 8
        %s346 = scalar_lea.vmem %s1, %s345
        %s347 = smul.u32 32, %s17
      $region60: #{tpu_custom_call.1} parent=51 // pred_fallthru
        _
    $region52: #{tpu_custom_call.1} parent=5 // pred_fallthru
      _
    %p348 = scmp.le.s32.totalorder 1, %s17
    %p349 = scmp.lt.s32.totalorder %s17, 3
    %p350 = pnand %p348, %p349
    %p351 = pneg %p350
    // Predicated region
    $region61: #{tpu_custom_call.1} parent=5 // pred_check
      _
    $region62: #{tpu_custom_call.1} parent=5 // pred_check_branch
      %353 = sbr.rel (%p350) target = $region64
    $region63: #{tpu_custom_call.1} parent=5 // pred_region
      %s354 = ssub.s32 %s17, 1
      %s355 = smul.u32 32, %s22
      %p356 = scmp.lt.s32.totalorder %s355, 63
      %s357 = scalar_select %p356, %s355, 63
      %s358 = smul.addr %s357, 8
      %s359 = scalar_lea.vmem %s0, %s358
      %p360 = pneg %p43
      %p361 = pneg %p40
      %s362 = smul.u32 32, %s22
      %p363 = scmp.lt.s32.totalorder %s362, 63
      %s364 = scalar_select %p363, %s362, 63
      %s365 = smul.addr %s364, 8
      %s366 = scalar_lea.vmem %s1, %s365
      %p367 = pneg %p69
      %p368 = pneg %p66
      %p369 = pneg %p90
      %p370 = pneg %p87
      %p371 = pneg %p111
      %p372 = pneg %p108
      %p373 = pneg %p132
      %p374 = pneg %p129
      %p375 = pneg %p153
      %p376 = pneg %p150
      %p377 = pneg %p174
      %p378 = pneg %p171
      %p379 = pneg %p195
      %p380 = pneg %p192
      %p381 = pneg %p216
      %p382 = pneg %p213
      %p383 = pneg %p237
      %p384 = pneg %p234
      %p385 = pneg %p258
      %p386 = pneg %p255
      %p387 = pneg %p284
      %p388 = pneg %p281
      %s389 = smul.u32 32, %s22
      %p390 = scmp.lt.s32.totalorder %s389, 63
      %s391 = scalar_select %p390, %s389, 63
      %s392 = smul.addr %s391, 8
      %s393 = scalar_lea.vmem %s11, %s392
      %s394 = smul.u32 32, %s22
      %p395 = scmp.lt.s32.totalorder %s394, 63
      %s396 = scalar_select %p395, %s394, 63
      %s397 = smul.addr %s396, 8
      %s398 = scalar_lea.vmem %s0, %s397
      %s399 = smul.u32 32, %s22
      %s400 = smul.u32 32, %s22
      %p401 = scmp.lt.s32.totalorder %s400, 63
      %s402 = scalar_select %p401, %s400, 63
      %s403 = smul.addr %s402, 8
      %s404 = scalar_lea.vmem %s1, %s403
      %s405 = smul.u32 32, %s22
      %s406 = smul.u32 32, %s22
      %p407 = scmp.lt.s32.totalorder %s406, 63
      %s408 = scalar_select %p407, %s406, 63
      %s409 = smul.addr %s408, 8
      %s410 = scalar_lea.vmem %s11, %s409
      %s411 = smul.u32 32, %s22
      %v413 = vld [vmem:[%s404] sm:$0xff]
      %v414 = vld [vmem:[%s404 + $0x8] sm:$0xff]
      %v415 = vld [vmem:[%s404 + $0x10] sm:$0xff]
      %v416 = vld [vmem:[%s404 + $0x18] sm:$0xff]
      %v417 = vld [vmem:[%s404 + $0x20] sm:$0xff]
      %v418 = vld [vmem:[%s404 + $0x28] sm:$0xff]
      %v419 = vld [vmem:[%s404 + $0x30] sm:$0xff]
      %v420 = vld [vmem:[%s404 + $0x38] sm:$0xff]
      %v421 = vld [vmem:[%s404 + $0x40] sm:$0xff]
      %v422 = vld [vmem:[%s404 + $0x48] sm:$0xff]
      %v423 = vld [vmem:[%s404 + $0x50] sm:$0xff]
      %v424 = vld [vmem:[%s404 + $0x58] sm:$0xff]
      %v425 = vld [vmem:[%s404 + $0x60] sm:$0xff]
      %v426 = vld [vmem:[%s404 + $0x68] sm:$0xff]
      %v427 = vld [vmem:[%s404 + $0x70] sm:$0xff]
      %v428 = vld [vmem:[%s404 + $0x78] sm:$0xff]
      %v429 = vld [vmem:[%s404 + $0x80] sm:$0xff]
      %v430 = vld [vmem:[%s404 + $0x88] sm:$0xff]
      %v431 = vld [vmem:[%s404 + $0x90] sm:$0xff]
      %v432 = vld [vmem:[%s404 + $0x98] sm:$0xff]
      %v433 = vld [vmem:[%s404 + $0xa0] sm:$0xff]
      %v434 = vld [vmem:[%s404 + $0xa8] sm:$0xff]
      %v435 = vld [vmem:[%s404 + $0xb0] sm:$0xff]
      %v436 = vld [vmem:[%s404 + $0xb8] sm:$0xff]
      %v437 = vld [vmem:[%s404 + $0xc0] sm:$0xff]
      %v438 = vld [vmem:[%s404 + $0xc8] sm:$0xff]
      %v439 = vld [vmem:[%s404 + $0xd0] sm:$0xff]
      %v440 = vld [vmem:[%s404 + $0xd8] sm:$0xff]
      %v441 = vld [vmem:[%s404 + $0xe0] sm:$0xff]
      %v442 = vld [vmem:[%s404 + $0xe8] sm:$0xff]
      %v443 = vld [vmem:[%s404 + $0xf0] sm:$0xff]
      %v444 = vld [vmem:[%s404 + $0xf8] sm:$0xff]
      %v445 = vpack.c.bf16 %v414, %v413
      %v446 = vpack.c.bf16 %v416, %v415
      %v447 = vpack.c.bf16 %v418, %v417
      %v448 = vpack.c.bf16 %v420, %v419
      %v449 = vpack.c.bf16 %v422, %v421
      %v450 = vpack.c.bf16 %v424, %v423
      %v451 = vpack.c.bf16 %v426, %v425
      %v452 = vpack.c.bf16 %v428, %v427
      %v453 = vpack.c.bf16 %v430, %v429
      %v454 = vpack.c.bf16 %v432, %v431
      %v455 = vpack.c.bf16 %v434, %v433
      %v456 = vpack.c.bf16 %v436, %v435
      %v457 = vpack.c.bf16 %v438, %v437
      %v458 = vpack.c.bf16 %v440, %v439
      %v459 = vpack.c.bf16 %v442, %v441
      %v460 = vpack.c.bf16 %v444, %v443
      %v461 = vld [vmem:[%s398] sm:$0xff]
      %v462 = vld [vmem:[%s398 + $0x8] sm:$0xff]
      %v463 = vld [vmem:[%s398 + $0x10] sm:$0xff]
      %v464 = vld [vmem:[%s398 + $0x18] sm:$0xff]
      %v465 = vld [vmem:[%s398 + $0x20] sm:$0xff]
      %v466 = vld [vmem:[%s398 + $0x28] sm:$0xff]
      %v467 = vld [vmem:[%s398 + $0x30] sm:$0xff]
      %v468 = vld [vmem:[%s398 + $0x38] sm:$0xff]
      %v469 = vld [vmem:[%s398 + $0x40] sm:$0xff]
      %v470 = vld [vmem:[%s398 + $0x48] sm:$0xff]
      %v471 = vld [vmem:[%s398 + $0x50] sm:$0xff]
      %v472 = vld [vmem:[%s398 + $0x58] sm:$0xff]
      %v473 = vld [vmem:[%s398 + $0x60] sm:$0xff]
      %v474 = vld [vmem:[%s398 + $0x68] sm:$0xff]
      %v475 = vld [vmem:[%s398 + $0x70] sm:$0xff]
      %v476 = vld [vmem:[%s398 + $0x78] sm:$0xff]
      %v477 = vld [vmem:[%s398 + $0x80] sm:$0xff]
      %v478 = vld [vmem:[%s398 + $0x88] sm:$0xff]
      %v479 = vld [vmem:[%s398 + $0x90] sm:$0xff]
      %v480 = vld [vmem:[%s398 + $0x98] sm:$0xff]
      %v481 = vld [vmem:[%s398 + $0xa0] sm:$0xff]
      %v482 = vld [vmem:[%s398 + $0xa8] sm:$0xff]
      %v483 = vld [vmem:[%s398 + $0xb0] sm:$0xff]
      %v484 = vld [vmem:[%s398 + $0xb8] sm:$0xff]
      %v485 = vld [vmem:[%s398 + $0xc0] sm:$0xff]
      %v486 = vld [vmem:[%s398 + $0xc8] sm:$0xff]
      %v487 = vld [vmem:[%s398 + $0xd0] sm:$0xff]
      %v488 = vld [vmem:[%s398 + $0xd8] sm:$0xff]
      %v489 = vld [vmem:[%s398 + $0xe0] sm:$0xff]
      %v490 = vld [vmem:[%s398 + $0xe8] sm:$0xff]
      %v491 = vld [vmem:[%s398 + $0xf0] sm:$0xff]
      %v492 = vld [vmem:[%s398 + $0xf8] sm:$0xff]
      %v493 = vpack.c.bf16 %v462, %v461
      %v494 = vpack.c.bf16 %v464, %v463
      %v495 = vpack.c.bf16 %v466, %v465
      %v496 = vpack.c.bf16 %v468, %v467
      %v497 = vpack.c.bf16 %v470, %v469
      %v498 = vpack.c.bf16 %v472, %v471
      %v499 = vpack.c.bf16 %v474, %v473
      %v500 = vpack.c.bf16 %v476, %v475
      %v501 = vpack.c.bf16 %v478, %v477
      %v502 = vpack.c.bf16 %v480, %v479
      %v503 = vpack.c.bf16 %v482, %v481
      %v504 = vpack.c.bf16 %v484, %v483
      %v505 = vpack.c.bf16 %v486, %v485
      %v506 = vpack.c.bf16 %v488, %v487
      %v507 = vpack.c.bf16 %v490, %v489
      %v508 = vpack.c.bf16 %v492, %v491
      %v509 = vld [vmem:[%s2] sm:$0xf]
      %v510 = vld [vmem:[%s2 + $0x4] sm:$0xf]
      %v511 = vld [vmem:[%s2 + $0x8] sm:$0xf]
      %v512 = vld [vmem:[%s2 + $0xc] sm:$0xf]
      %v513 = vld [vmem:[%s2 + $0x10] sm:$0xf]
      %v514 = vld [vmem:[%s2 + $0x14] sm:$0xf]
      %v515 = vld [vmem:[%s2 + $0x18] sm:$0xf]
      %v516 = vld [vmem:[%s2 + $0x1c] sm:$0xf]
      %v517 = vld [vmem:[%s2 + $0x20] sm:$0xf]
      %v518 = vld [vmem:[%s2 + $0x24] sm:$0xf]
      %v519 = vld [vmem:[%s2 + $0x28] sm:$0xf]
      %v520 = vld [vmem:[%s2 + $0x2c] sm:$0xf]
      %v521 = vld [vmem:[%s2 + $0x30] sm:$0xf]
      %v522 = vld [vmem:[%s2 + $0x34] sm:$0xf]
      %v523 = vld [vmem:[%s2 + $0x38] sm:$0xf]
      %v524 = vld [vmem:[%s2 + $0x3c] sm:$0xf]
      %v525 = vld [vmem:[%s3] sm:$0xf]
      %vm526 = vcmask 64512
      %v528 = vsel %vm526, %v493, 0
      %v531 = vsel %vm526, %v494, 0
      %v534 = vsel %vm526, %v495, 0
      %v537 = vsel %vm526, %v496, 0
      %v540 = vsel %vm526, %v497, 0
      %v543 = vsel %vm526, %v498, 0
      %v546 = vsel %vm526, %v499, 0
      %v549 = vsel %vm526, %v500, 0
      %v552 = vsel %vm526, %v501, 0
      %v555 = vsel %vm526, %v502, 0
      %v558 = vsel %vm526, %v503, 0
      %v561 = vsel %vm526, %v504, 0
      %v564 = vsel %vm526, %v505, 0
      %v567 = vsel %vm526, %v506, 0
      %v570 = vsel %vm526, %v507, 0
      %v573 = vsel %vm526, %v508, 0
      %vm575 = vcmask 1043456
      %v577 = vsel %vm575, %v525, 0
      %579 = vmatprep.subr.bf16.mxu0 0
      %580 = vmatpush1.bf16.msra.mxu0 %v577
      %581 = vmatprep.subr.bf16.mxu0 0
      %582 = vmatpush1.bf16.msra.mxu0 0
      %583 = vmatprep.subr.bf16.mxu0 0
      %584 = vmatpush1.bf16.msra.mxu0 0
      %585 = vmatprep.subr.bf16.mxu0 0
      %586 = vmatpush1.bf16.msra.mxu0 0
      %587 = vmatprep.subr.bf16.mxu0 0
      %588 = vmatpush1.bf16.msra.mxu0 0
      %589 = vmatprep.subr.bf16.mxu0 0
      %590 = vmatpush1.bf16.msra.mxu0 0
      %591 = vmatprep.subr.bf16.mxu0 0
      %592 = vmatpush1.bf16.msra.mxu0 0
      %593 = vmatprep.subr.bf16.mxu0 0
      %594 = vmatpush1.bf16.msra.mxu0 0
      %595 = vmatprep.subr.bf16.mxu0 0
      %596 = vmatpush1.bf16.msra.mxu0 0
      %597 = vmatprep.subr.bf16.mxu0 0
      %598 = vmatpush1.bf16.msra.mxu0 0
      %599 = vmatprep.subr.bf16.mxu0 0
      %600 = vmatpush1.bf16.msra.mxu0 0
      %601 = vmatprep.subr.bf16.mxu0 0
      %602 = vmatpush1.bf16.msra.mxu0 0
      %603 = vmatprep.subr.bf16.mxu0 0
      %604 = vmatpush1.bf16.msra.mxu0 0
      %605 = vmatprep.subr.bf16.mxu0 0
      %606 = vmatpush1.bf16.msra.mxu0 0
      %607 = vmatprep.subr.bf16.mxu0 0
      %608 = vmatpush1.bf16.msra.mxu0 0
      %609 = vmatprep.subr.bf16.mxu0 0
      %610 = vmatpush1.bf16.msra.mxu0 0
      %611 = vmatprep.mubr.bf16.mxu0 0
      %612 = vmatmul.mubr.bf16.gmra.mrb[0].mxu0 %v528
      %v613 = vpop.f32.mrb[0].mxu0
      %v614 = vadd.f32 0.0, %v613
      %v615 = vpop.f32.mrb[0].mxu0
      %v616 = vpop.f32.mrb[0].mxu0
      %v617 = vadd.f32 0.0, %v616
      %v618 = vpop.f32.mrb[0].mxu0
      %619 = vmatprep.mubr.bf16.mxu0 0
      %620 = vmatmul.mubr.bf16.gmra.mrb[0].mxu0 %v531
      %v621 = vpop.f32.mrb[0].mxu0
      %v622 = vadd.f32 0.0, %v621
      %v623 = vpop.f32.mrb[0].mxu0
      %v624 = vpop.f32.mrb[0].mxu0
      %v625 = vadd.f32 0.0, %v624
      %v626 = vpop.f32.mrb[0].mxu0
      %627 = vmatprep.mubr.bf16.mxu0 0
      %628 = vmatmul.mubr.bf16.gmra.mrb[0].mxu0 %v534
      %v629 = vpop.f32.mrb[0].mxu0
      %v630 = vadd.f32 0.0, %v629
      %v631 = vpop.f32.mrb[0].mxu0
      %v632 = vpop.f32.mrb[0].mxu0
      %v633 = vadd.f32 0.0, %v632
      %v634 = vpop.f32.mrb[0].mxu0
      %635 = vmatprep.mubr.bf16.mxu0 0
      %636 = vmatmul.mubr.bf16.gmra.mrb[0].mxu0 %v537
      %v637 = vpop.f32.mrb[0].mxu0
      %v638 = vadd.f32 0.0, %v637
      %v639 = vpop.f32.mrb[0].mxu0
      %v640 = vpop.f32.mrb[0].mxu0
      %v641 = vadd.f32 0.0, %v640
      %v642 = vpop.f32.mrb[0].mxu0
      %643 = vmatprep.mubr.bf16.mxu0 0
      %644 = vmatmul.mubr.bf16.gmra.mrb[0].mxu0 %v540
      %v645 = vpop.f32.mrb[0].mxu0
      %v646 = vadd.f32 0.0, %v645
      %v647 = vpop.f32.mrb[0].mxu0
      %v648 = vpop.f32.mrb[0].mxu0
      %v649 = vadd.f32 0.0, %v648
      %v650 = vpop.f32.mrb[0].mxu0
      %651 = vmatprep.mubr.bf16.mxu0 0
      %652 = vmatmul.mubr.bf16.gmra.mrb[0].mxu0 %v543
      %v653 = vpop.f32.mrb[0].mxu0
      %v654 = vadd.f32 0.0, %v653
      %v655 = vpop.f32.mrb[0].mxu0
      %v656 = vpop.f32.mrb[0].mxu0
      %v657 = vadd.f32 0.0, %v656
      %v658 = vpop.f32.mrb[0].mxu0
      %659 = vmatprep.mubr.bf16.mxu0 0
      %660 = vmatmul.mubr.bf16.gmra.mrb[0].mxu0 %v546
      %v661 = vpop.f32.mrb[0].mxu0
      %v662 = vadd.f32 0.0, %v661
      %v663 = vpop.f32.mrb[0].mxu0
      %v664 = vpop.f32.mrb[0].mxu0
      %v665 = vadd.f32 0.0, %v664
      %v666 = vpop.f32.mrb[0].mxu0
      %667 = vmatprep.mubr.bf16.mxu0 0
      %668 = vmatmul.mubr.bf16.gmra.mrb[0].mxu0 %v549
      %v669 = vpop.f32.mrb[0].mxu0
      %v670 = vadd.f32 0.0, %v669
      %v671 = vpop.f32.mrb[0].mxu0
      %v672 = vpop.f32.mrb[0].mxu0
      %v673 = vadd.f32 0.0, %v672
      %v674 = vpop.f32.mrb[0].mxu0
      %675 = vmatprep.mubr.bf16.mxu0 0
      %676 = vmatmul.mubr.bf16.gmra.mrb[0].mxu0 %v552
      %v677 = vpop.f32.mrb[0].mxu0
      %v678 = vadd.f32 0.0, %v677
      %v679 = vpop.f32.mrb[0].mxu0
      %v680 = vpop.f32.mrb[0].mxu0
      %v681 = vadd.f32 0.0, %v680
      %v682 = vpop.f32.mrb[0].mxu0
      %683 = vmatprep.mubr.bf16.mxu0 0
      %684 = vmatmul.mubr.bf16.gmra.mrb[0].mxu0 %v555
      %v685 = vpop.f32.mrb[0].mxu0
      %v686 = vadd.f32 0.0, %v685
      %v687 = vpop.f32.mrb[0].mxu0
      %v688 = vpop.f32.mrb[0].mxu0
      %v689 = vadd.f32 0.0, %v688
      %v690 = vpop.f32.mrb[0].mxu0
      %691 = vmatprep.mubr.bf16.mxu0 0
      %692 = vmatmul.mubr.bf16.gmra.mrb[0].mxu0 %v558
      %v693 = vpop.f32.mrb[0].mxu0
      %v694 = vadd.f32 0.0, %v693
      %v695 = vpop.f32.mrb[0].mxu0
      %v696 = vpop.f32.mrb[0].mxu0
      %v697 = vadd.f32 0.0, %v696
      %v698 = vpop.f32.mrb[0].mxu0
      %699 = vmatprep.mubr.bf16.mxu0 0
      %700 = vmatmul.mubr.bf16.gmra.mrb[0].mxu0 %v561
      %v701 = vpop.f32.mrb[0].mxu0
      %v702 = vadd.f32 0.0, %v701
      %v703 = vpop.f32.mrb[0].mxu0
      %v704 = vpop.f32.mrb[0].mxu0
      %v705 = vadd.f32 0.0, %v704
      %v706 = vpop.f32.mrb[0].mxu0
      %707 = vmatprep.mubr.bf16.mxu0 0
      %708 = vmatmul.mubr.bf16.gmra.mrb[0].mxu0 %v564
      %v709 = vpop.f32.mrb[0].mxu0
      %v710 = vadd.f32 0.0, %v709
      %v711 = vpop.f32.mrb[0].mxu0
      %v712 = vpop.f32.mrb[0].mxu0
      %v713 = vadd.f32 0.0, %v712
      %v714 = vpop.f32.mrb[0].mxu0
      %715 = vmatprep.mubr.bf16.mxu0 0
      %716 = vmatmul.mubr.bf16.gmra.mrb[0].mxu0 %v567
      %v717 = vpop.f32.mrb[0].mxu0
      %v718 = vadd.f32 0.0, %v717
      %v719 = vpop.f32.mrb[0].mxu0
      %v720 = vpop.f32.mrb[0].mxu0
      %v721 = vadd.f32 0.0, %v720
      %v722 = vpop.f32.mrb[0].mxu0
      %723 = vmatprep.mubr.bf16.mxu0 0
      %724 = vmatmul.mubr.bf16.gmra.mrb[0].mxu0 %v570
      %v725 = vpop.f32.mrb[0].mxu0
      %v726 = vadd.f32 0.0, %v725
      %v727 = vpop.f32.mrb[0].mxu0
      %v728 = vpop.f32.mrb[0].mxu0
      %v729 = vadd.f32 0.0, %v728
      %v730 = vpop.f32.mrb[0].mxu0
      %731 = vmatprep.mubr.bf16.mxu0 0
      %732 = vmatmul.mubr.bf16.gmra.mrb[0].mxu0 %v573
      %v733 = vpop.f32.mrb[0].mxu0
      %v734 = vadd.f32 0.0, %v733
      %v735 = vpop.f32.mrb[0].mxu0
      %v736 = vpop.f32.mrb[0].mxu0
      %v737 = vadd.f32 0.0, %v736
      %v738 = vpop.f32.mrb[0].mxu0
      %739 = vdwg.mxu0
      %v756 = vunpack.c.l.b16 %v509
      %v757 = vunpack.c.l.b16 %v510
      %v758 = vunpack.c.l.b16 %v511
      %v759 = vunpack.c.l.b16 %v512
      %v760 = vunpack.c.l.b16 %v513
      %v761 = vunpack.c.l.b16 %v514
      %v762 = vunpack.c.l.b16 %v515
      %v763 = vunpack.c.l.b16 %v516
      %v764 = vunpack.c.l.b16 %v517
      %v765 = vunpack.c.l.b16 %v518
      %v766 = vunpack.c.l.b16 %v519
      %v767 = vunpack.c.l.b16 %v520
      %v768 = vunpack.c.l.b16 %v521
      %v769 = vunpack.c.l.b16 %v522
      %v770 = vunpack.c.l.b16 %v523
      %v771 = vunpack.c.l.b16 %v524
      %v772 = vpack.c.b16 %v757, %v756
      %v773 = vpack.c.b16 %v759, %v758
      %v774 = vpack.c.b16 %v761, %v760
      %v775 = vpack.c.b16 %v763, %v762
      %v776 = vpack.c.b16 %v765, %v764
      %v777 = vpack.c.b16 %v767, %v766
      %v778 = vpack.c.b16 %v769, %v768
      %v779 = vpack.c.b16 %v771, %v770
      %788 = vmatprep.subr.bf16.mxu0 0
      %789 = vmatpush1.bf16.msra.mxu0 %v772
      %790 = vmatprep.subr.bf16.mxu0 0
      %791 = vmatpush1.bf16.msra.mxu0 %v773
      %792 = vmatprep.subr.bf16.mxu0 0
      %793 = vmatpush1.bf16.msra.mxu0 %v774
      %794 = vmatprep.subr.bf16.mxu0 0
      %795 = vmatpush1.bf16.msra.mxu0 %v775
      %796 = vmatprep.subr.bf16.mxu0 0
      %797 = vmatpush1.bf16.msra.mxu0 %v776
      %798 = vmatprep.subr.bf16.mxu0 0
      %799 = vmatpush1.bf16.msra.mxu0 %v777
      %800 = vmatprep.subr.bf16.mxu0 0
      %801 = vmatpush1.bf16.msra.mxu0 %v778
      %802 = vmatprep.subr.bf16.mxu0 0
      %803 = vmatpush1.bf16.msra.mxu0 %v779
      %804 = vmatprep.subr.bf16.mxu0 0
      %805 = vmatpush1.bf16.msra.mxu0 0
      %806 = vmatprep.subr.bf16.mxu0 0
      %807 = vmatpush1.bf16.msra.mxu0 0
      %808 = vmatprep.subr.bf16.mxu0 0
      %809 = vmatpush1.bf16.msra.mxu0 0
      %810 = vmatprep.subr.bf16.mxu0 0
      %811 = vmatpush1.bf16.msra.mxu0 0
      %812 = vmatprep.subr.bf16.mxu0 0
      %813 = vmatpush1.bf16.msra.mxu0 0
      %814 = vmatprep.subr.bf16.mxu0 0
      %815 = vmatpush1.bf16.msra.mxu0 0
      %816 = vmatprep.subr.bf16.mxu0 0
      %817 = vmatpush1.bf16.msra.mxu0 0
      %818 = vmatprep.subr.bf16.mxu0 0
      %819 = vmatpush1.bf16.msra.mxu0 0
      %820 = vmatprep.mubr.bf16.mxu0 0
      %821 = vmatmul.mubr.bf16.gmra.mrb[0].mxu0 %v445
      %v822 = vpop.f32.mrb[0].mxu0
      %v823 = vadd.f32 %v614, %v822
      %v824 = vpop.f32.mrb[0].mxu0
      %v825 = vpop.f32.mrb[0].mxu0
      %v826 = vadd.f32 %v617, %v825
      %v827 = vpop.f32.mrb[0].mxu0
      %828 = vmatprep.mubr.bf16.mxu0 0
      %829 = vmatmul.mubr.bf16.gmra.mrb[0].mxu0 %v446
      %v830 = vpop.f32.mrb[0].mxu0
      %v831 = vadd.f32 %v622, %v830
      %v832 = vpop.f32.mrb[0].mxu0
      %v833 = vpop.f32.mrb[0].mxu0
      %v834 = vadd.f32 %v625, %v833
      %v835 = vpop.f32.mrb[0].mxu0
      %836 = vmatprep.mubr.bf16.mxu0 0
      %837 = vmatmul.mubr.bf16.gmra.mrb[0].mxu0 %v447
      %v838 = vpop.f32.mrb[0].mxu0
      %v839 = vadd.f32 %v630, %v838
      %v840 = vpop.f32.mrb[0].mxu0
      %v841 = vpop.f32.mrb[0].mxu0
      %v842 = vadd.f32 %v633, %v841
      %v843 = vpop.f32.mrb[0].mxu0
      %844 = vmatprep.mubr.bf16.mxu0 0
      %845 = vmatmul.mubr.bf16.gmra.mrb[0].mxu0 %v448
      %v846 = vpop.f32.mrb[0].mxu0
      %v847 = vadd.f32 %v638, %v846
      %v848 = vpop.f32.mrb[0].mxu0
      %v849 = vpop.f32.mrb[0].mxu0
      %v850 = vadd.f32 %v641, %v849
      %v851 = vpop.f32.mrb[0].mxu0
      %852 = vmatprep.mubr.bf16.mxu0 0
      %853 = vmatmul.mubr.bf16.gmra.mrb[0].mxu0 %v449
      %v854 = vpop.f32.mrb[0].mxu0
      %v855 = vadd.f32 %v646, %v854
      %v856 = vpop.f32.mrb[0].mxu0
      %v857 = vpop.f32.mrb[0].mxu0
      %v858 = vadd.f32 %v649, %v857
      %v859 = vpop.f32.mrb[0].mxu0
      %860 = vmatprep.mubr.bf16.mxu0 0
      %861 = vmatmul.mubr.bf16.gmra.mrb[0].mxu0 %v450
      %v862 = vpop.f32.mrb[0].mxu0
      %v863 = vadd.f32 %v654, %v862
      %v864 = vpop.f32.mrb[0].mxu0
      %v865 = vpop.f32.mrb[0].mxu0
      %v866 = vadd.f32 %v657, %v865
      %v867 = vpop.f32.mrb[0].mxu0
      %868 = vmatprep.mubr.bf16.mxu0 0
      %869 = vmatmul.mubr.bf16.gmra.mrb[0].mxu0 %v451
      %v870 = vpop.f32.mrb[0].mxu0
      %v871 = vadd.f32 %v662, %v870
      %v872 = vpop.f32.mrb[0].mxu0
      %v873 = vpop.f32.mrb[0].mxu0
      %v874 = vadd.f32 %v665, %v873
      %v875 = vpop.f32.mrb[0].mxu0
      %876 = vmatprep.mubr.bf16.mxu0 0
      %877 = vmatmul.mubr.bf16.gmra.mrb[0].mxu0 %v452
      %v878 = vpop.f32.mrb[0].mxu0
      %v879 = vadd.f32 %v670, %v878
      %v880 = vpop.f32.mrb[0].mxu0
      %v881 = vpop.f32.mrb[0].mxu0
      %v882 = vadd.f32 %v673, %v881
      %v883 = vpop.f32.mrb[0].mxu0
      %884 = vmatprep.mubr.bf16.mxu0 0
      %885 = vmatmul.mubr.bf16.gmra.mrb[0].mxu0 %v453
      %v886 = vpop.f32.mrb[0].mxu0
      %v887 = vadd.f32 %v678, %v886
      %v888 = vpop.f32.mrb[0].mxu0
      %v889 = vpop.f32.mrb[0].mxu0
      %v890 = vadd.f32 %v681, %v889
      %v891 = vpop.f32.mrb[0].mxu0
      %892 = vmatprep.mubr.bf16.mxu0 0
      %893 = vmatmul.mubr.bf16.gmra.mrb[0].mxu0 %v454
      %v894 = vpop.f32.mrb[0].mxu0
      %v895 = vadd.f32 %v686, %v894
      %v896 = vpop.f32.mrb[0].mxu0
      %v897 = vpop.f32.mrb[0].mxu0
      %v898 = vadd.f32 %v689, %v897
      %v899 = vpop.f32.mrb[0].mxu0
      %900 = vmatprep.mubr.bf16.mxu0 0
      %901 = vmatmul.mubr.bf16.gmra.mrb[0].mxu0 %v455
      %v902 = vpop.f32.mrb[0].mxu0
      %v903 = vadd.f32 %v694, %v902
      %v904 = vpop.f32.mrb[0].mxu0
      %v905 = vpop.f32.mrb[0].mxu0
      %v906 = vadd.f32 %v697, %v905
      %v907 = vpop.f32.mrb[0].mxu0
      %908 = vmatprep.mubr.bf16.mxu0 0
      %909 = vmatmul.mubr.bf16.gmra.mrb[0].mxu0 %v456
      %v910 = vpop.f32.mrb[0].mxu0
      %v911 = vadd.f32 %v702, %v910
      %v912 = vpop.f32.mrb[0].mxu0
      %v913 = vpop.f32.mrb[0].mxu0
      %v914 = vadd.f32 %v705, %v913
      %v915 = vpop.f32.mrb[0].mxu0
      %916 = vmatprep.mubr.bf16.mxu0 0
      %917 = vmatmul.mubr.bf16.gmra.mrb[0].mxu0 %v457
      %v918 = vpop.f32.mrb[0].mxu0
      %v919 = vadd.f32 %v710, %v918
      %v920 = vpop.f32.mrb[0].mxu0
      %v921 = vpop.f32.mrb[0].mxu0
      %v922 = vadd.f32 %v713, %v921
      %v923 = vpop.f32.mrb[0].mxu0
      %924 = vmatprep.mubr.bf16.mxu0 0
      %925 = vmatmul.mubr.bf16.gmra.mrb[0].mxu0 %v458
      %v926 = vpop.f32.mrb[0].mxu0
      %v927 = vadd.f32 %v718, %v926
      %v928 = vpop.f32.mrb[0].mxu0
      %v929 = vpop.f32.mrb[0].mxu0
      %v930 = vadd.f32 %v721, %v929
      %v931 = vpop.f32.mrb[0].mxu0
      %932 = vmatprep.mubr.bf16.mxu0 0
      %933 = vmatmul.mubr.bf16.gmra.mrb[0].mxu0 %v459
      %v934 = vpop.f32.mrb[0].mxu0
      %v935 = vadd.f32 %v726, %v934
      %v936 = vpop.f32.mrb[0].mxu0
      %v937 = vpop.f32.mrb[0].mxu0
      %v938 = vadd.f32 %v729, %v937
      %v939 = vpop.f32.mrb[0].mxu0
      %940 = vmatprep.mubr.bf16.mxu0 0
      %941 = vmatmul.mubr.bf16.gmra.mrb[0].mxu0 %v460
      %v942 = vpop.f32.mrb[0].mxu0
      %v943 = vadd.f32 %v734, %v942
      %v944 = vpop.f32.mrb[0].mxu0
      %v945 = vpop.f32.mrb[0].mxu0
      %v946 = vadd.f32 %v737, %v945
      %v947 = vpop.f32.mrb[0].mxu0
      %948 = vdwg.mxu0
      %v949 = vld [vmem:[%s4] sm:$0x1]
      %v951 = vlaneseq
      %v952 = vshrl.u32 %v951, 7
      %v953 = vsub.s32 0, %v952
      %v954 = vrot.slane %v949, %v953
      %v956 = vadd.f32 %v823, %v954
      %v957 = vadd.f32 %v826, %v954
      %v958 = vadd.f32 %v831, %v954
      %v959 = vadd.f32 %v834, %v954
      %v960 = vadd.f32 %v839, %v954
      %v961 = vadd.f32 %v842, %v954
      %v962 = vadd.f32 %v847, %v954
      %v963 = vadd.f32 %v850, %v954
      %v964 = vadd.f32 %v855, %v954
      %v965 = vadd.f32 %v858, %v954
      %v966 = vadd.f32 %v863, %v954
      %v967 = vadd.f32 %v866, %v954
      %v968 = vadd.f32 %v871, %v954
      %v969 = vadd.f32 %v874, %v954
      %v970 = vadd.f32 %v879, %v954
      %v971 = vadd.f32 %v882, %v954
      %v972 = vadd.f32 %v887, %v954
      %v973 = vadd.f32 %v890, %v954
      %v974 = vadd.f32 %v895, %v954
      %v975 = vadd.f32 %v898, %v954
      %v976 = vadd.f32 %v903, %v954
      %v977 = vadd.f32 %v906, %v954
      %v978 = vadd.f32 %v911, %v954
      %v979 = vadd.f32 %v914, %v954
      %v980 = vadd.f32 %v919, %v954
      %v981 = vadd.f32 %v922, %v954
      %v982 = vadd.f32 %v927, %v954
      %v983 = vadd.f32 %v930, %v954
      %v984 = vadd.f32 %v935, %v954
      %v985 = vadd.f32 %v938, %v954
      %v986 = vadd.f32 %v943, %v954
      %v987 = vadd.f32 %v946, %v954
      %v988 = vmax.f32 %v956, 0.0
      %v989 = vmax.f32 %v957, 0.0
      %v990 = vmax.f32 %v958, 0.0
      %v991 = vmax.f32 %v959, 0.0
      %v992 = vmax.f32 %v960, 0.0
      %v993 = vmax.f32 %v961, 0.0
      %v994 = vmax.f32 %v962, 0.0
      %v995 = vmax.f32 %v963, 0.0
      %v996 = vmax.f32 %v964, 0.0
      %v997 = vmax.f32 %v965, 0.0
      %v998 = vmax.f32 %v966, 0.0
      %v999 = vmax.f32 %v967, 0.0
      %v1000 = vmax.f32 %v968, 0.0
      %v1001 = vmax.f32 %v969, 0.0
      %v1002 = vmax.f32 %v970, 0.0
      %v1003 = vmax.f32 %v971, 0.0
      %v1004 = vmax.f32 %v972, 0.0
      %v1005 = vmax.f32 %v973, 0.0
      %v1006 = vmax.f32 %v974, 0.0
      %v1007 = vmax.f32 %v975, 0.0
      %v1008 = vmax.f32 %v976, 0.0
      %v1009 = vmax.f32 %v977, 0.0
      %v1010 = vmax.f32 %v978, 0.0
      %v1011 = vmax.f32 %v979, 0.0
      %v1012 = vmax.f32 %v980, 0.0
      %v1013 = vmax.f32 %v981, 0.0
      %v1014 = vmax.f32 %v982, 0.0
      %v1015 = vmax.f32 %v983, 0.0
      %v1016 = vmax.f32 %v984, 0.0
      %v1017 = vmax.f32 %v985, 0.0
      %v1018 = vmax.f32 %v986, 0.0
      %v1019 = vmax.f32 %v987, 0.0
      %v1020 = vpack.c.bf16 %v989, %v988
      %v1021 = vpack.c.bf16 %v991, %v990
      %v1022 = vpack.c.bf16 %v993, %v992
      %v1023 = vpack.c.bf16 %v995, %v994
      %v1024 = vpack.c.bf16 %v997, %v996
      %v1025 = vpack.c.bf16 %v999, %v998
      %v1026 = vpack.c.bf16 %v1001, %v1000
      %v1027 = vpack.c.bf16 %v1003, %v1002
      %v1028 = vpack.c.bf16 %v1005, %v1004
      %v1029 = vpack.c.bf16 %v1007, %v1006
      %v1030 = vpack.c.bf16 %v1009, %v1008
      %v1031 = vpack.c.bf16 %v1011, %v1010
      %v1032 = vpack.c.bf16 %v1013, %v1012
      %v1033 = vpack.c.bf16 %v1015, %v1014
      %v1034 = vpack.c.bf16 %v1017, %v1016
      %v1035 = vpack.c.bf16 %v1019, %v1018
      %v1036 = vld [vmem:[%s5] sm:$0xf]
      %v1037 = vld [vmem:[%s5 + $0x4] sm:$0xf]
      %v1038 = vld [vmem:[%s5 + $0x8] sm:$0xf]
      %v1039 = vld [vmem:[%s5 + $0xc] sm:$0xf]
      %v1040 = vld [vmem:[%s5 + $0x10] sm:$0xf]
      %v1041 = vld [vmem:[%s5 + $0x14] sm:$0xf]
      %v1042 = vld [vmem:[%s5 + $0x18] sm:$0xf]
      %v1043 = vld [vmem:[%s5 + $0x1c] sm:$0xf]
      %v1044 = vld [vmem:[%s5 + $0x20] sm:$0xf]
      %v1045 = vld [vmem:[%s5 + $0x24] sm:$0xf]
      %v1046 = vld [vmem:[%s5 + $0x28] sm:$0xf]
      %v1047 = vld [vmem:[%s5 + $0x2c] sm:$0xf]
      %v1048 = vld [vmem:[%s6] sm:$0x1]
      %v1050 = vlaneseq
      %v1051 = vshrl.u32 %v1050, 7
      %v1052 = vsub.s32 0, %v1051
      %v1053 = vrot.slane %v1048, %v1052
      %v1067 = vunpack.c.l.b16 %v1036
      %v1068 = vunpack.c.l.b16 %v1037
      %v1069 = vunpack.c.l.b16 %v1038
      %v1070 = vunpack.c.l.b16 %v1039
      %v1071 = vunpack.c.l.b16 %v1040
      %v1072 = vunpack.c.l.b16 %v1041
      %v1073 = vunpack.c.l.b16 %v1042
      %v1074 = vunpack.c.l.b16 %v1043
      %v1075 = vunpack.c.l.b16 %v1044
      %v1076 = vunpack.c.l.b16 %v1045
      %v1077 = vunpack.c.l.b16 %v1046
      %v1078 = vunpack.c.l.b16 %v1047
      %v1079 = vpack.c.b16 %v1068, %v1067
      %v1080 = vpack.c.b16 %v1070, %v1069
      %v1081 = vpack.c.b16 %v1072, %v1071
      %v1082 = vpack.c.b16 %v1074, %v1073
      %v1083 = vpack.c.b16 %v1076, %v1075
      %v1084 = vpack.c.b16 %v1078, %v1077
      %vm1091 = vcmask 785408
      %v1093 = vsel %vm1091, %v1020, 0
      %v1096 = vsel %vm1091, %v1021, 0
      %v1099 = vsel %vm1091, %v1022, 0
      %v1102 = vsel %vm1091, %v1023, 0
      %v1105 = vsel %vm1091, %v1024, 0
      %v1108 = vsel %vm1091, %v1025, 0
      %v1111 = vsel %vm1091, %v1026, 0
      %v1114 = vsel %vm1091, %v1027, 0
      %v1117 = vsel %vm1091, %v1028, 0
      %v1120 = vsel %vm1091, %v1029, 0
      %v1123 = vsel %vm1091, %v1030, 0
      %v1126 = vsel %vm1091, %v1031, 0
      %v1129 = vsel %vm1091, %v1032, 0
      %v1132 = vsel %vm1091, %v1033, 0
      %v1135 = vsel %vm1091, %v1034, 0
      %v1138 = vsel %vm1091, %v1035, 0
      %1140 = vmatprep.subr.bf16.mxu0 0
      %1141 = vmatpush1.bf16.msra.mxu0 %v1079
      %1142 = vmatprep.subr.bf16.mxu0 0
      %1143 = vmatpush1.bf16.msra.mxu0 %v1080
      %1144 = vmatprep.subr.bf16.mxu0 0
      %1145 = vmatpush1.bf16.msra.mxu0 %v1081
      %1146 = vmatprep.subr.bf16.mxu0 0
      %1147 = vmatpush1.bf16.msra.mxu0 %v1082
      %1148 = vmatprep.subr.bf16.mxu0 0
      %1149 = vmatpush1.bf16.msra.mxu0 %v1083
      %1150 = vmatprep.subr.bf16.mxu0 0
      %1151 = vmatpush1.bf16.msra.mxu0 %v1084
      %1152 = vmatprep.subr.bf16.mxu0 0
      %1153 = vmatpush1.bf16.msra.mxu0 0
      %1154 = vmatprep.subr.bf16.mxu0 0
      %1155 = vmatpush1.bf16.msra.mxu0 0
      %1156 = vmatprep.subr.bf16.mxu0 0
      %1157 = vmatpush1.bf16.msra.mxu0 0
      %1158 = vmatprep.subr.bf16.mxu0 0
      %1159 = vmatpush1.bf16.msra.mxu0 0
      %1160 = vmatprep.subr.bf16.mxu0 0
      %1161 = vmatpush1.bf16.msra.mxu0 0
      %1162 = vmatprep.subr.bf16.mxu0 0
      %1163 = vmatpush1.bf16.msra.mxu0 0
      %1164 = vmatprep.subr.bf16.mxu0 0
      %1165 = vmatpush1.bf16.msra.mxu0 0
      %1166 = vmatprep.subr.bf16.mxu0 0
      %1167 = vmatpush1.bf16.msra.mxu0 0
      %1168 = vmatprep.subr.bf16.mxu0 0
      %1169 = vmatpush1.bf16.msra.mxu0 0
      %1170 = vmatprep.subr.bf16.mxu0 0
      %1171 = vmatpush1.bf16.msra.mxu0 0
      %1172 = vmatprep.mubr.bf16.mxu0 0
      %1173 = vmatmul.mubr.bf16.gmra.mrb[0].mxu0 %v1093
      %v1174 = vpop.f32.mrb[0].mxu0
      %v1175 = vadd.f32 %v1053, %v1174
      %v1176 = vpop.f32.mrb[0].mxu0
      %v1177 = vpop.f32.mrb[0].mxu0
      %v1178 = vadd.f32 %v1053, %v1177
      %v1179 = vpop.f32.mrb[0].mxu0
      %1180 = vmatprep.mubr.bf16.mxu0 0
      %1181 = vmatmul.mubr.bf16.gmra.mrb[0].mxu0 %v1096
      %v1182 = vpop.f32.mrb[0].mxu0
      %v1183 = vadd.f32 %v1053, %v1182
      %v1184 = vpop.f32.mrb[0].mxu0
      %v1185 = vpop.f32.mrb[0].mxu0
      %v1186 = vadd.f32 %v1053, %v1185
      %v1187 = vpop.f32.mrb[0].mxu0
      %1188 = vmatprep.mubr.bf16.mxu0 0
      %1189 = vmatmul.mubr.bf16.gmra.mrb[0].mxu0 %v1099
      %v1190 = vpop.f32.mrb[0].mxu0
      %v1191 = vadd.f32 %v1053, %v1190
      %v1192 = vpop.f32.mrb[0].mxu0
      %v1193 = vpop.f32.mrb[0].mxu0
      %v1194 = vadd.f32 %v1053, %v1193
      %v1195 = vpop.f32.mrb[0].mxu0
      %1196 = vmatprep.mubr.bf16.mxu0 0
      %1197 = vmatmul.mubr.bf16.gmra.mrb[0].mxu0 %v1102
      %v1198 = vpop.f32.mrb[0].mxu0
      %v1199 = vadd.f32 %v1053, %v1198
      %v1200 = vpop.f32.mrb[0].mxu0
      %v1201 = vpop.f32.mrb[0].mxu0
      %v1202 = vadd.f32 %v1053, %v1201
      %v1203 = vpop.f32.mrb[0].mxu0
      %1204 = vmatprep.mubr.bf16.mxu0 0
      %1205 = vmatmul.mubr.bf16.gmra.mrb[0].mxu0 %v1105
      %v1206 = vpop.f32.mrb[0].mxu0
      %v1207 = vadd.f32 %v1053, %v1206
      %v1208 = vpop.f32.mrb[0].mxu0
      %v1209 = vpop.f32.mrb[0].mxu0
      %v1210 = vadd.f32 %v1053, %v1209
      %v1211 = vpop.f32.mrb[0].mxu0
      %1212 = vmatprep.mubr.bf16.mxu0 0
      %1213 = vmatmul.mubr.bf16.gmra.mrb[0].mxu0 %v1108
      %v1214 = vpop.f32.mrb[0].mxu0
      %v1215 = vadd.f32 %v1053, %v1214
      %v1216 = vpop.f32.mrb[0].mxu0
      %v1217 = vpop.f32.mrb[0].mxu0
      %v1218 = vadd.f32 %v1053, %v1217
      %v1219 = vpop.f32.mrb[0].mxu0
      %1220 = vmatprep.mubr.bf16.mxu0 0
      %1221 = vmatmul.mubr.bf16.gmra.mrb[0].mxu0 %v1111
      %v1222 = vpop.f32.mrb[0].mxu0
      %v1223 = vadd.f32 %v1053, %v1222
      %v1224 = vpop.f32.mrb[0].mxu0
      %v1225 = vpop.f32.mrb[0].mxu0
      %v1226 = vadd.f32 %v1053, %v1225
      %v1227 = vpop.f32.mrb[0].mxu0
      %1228 = vmatprep.mubr.bf16.mxu0 0
      %1229 = vmatmul.mubr.bf16.gmra.mrb[0].mxu0 %v1114
      %v1230 = vpop.f32.mrb[0].mxu0
      %v1231 = vadd.f32 %v1053, %v1230
      %v1232 = vpop.f32.mrb[0].mxu0
      %v1233 = vpop.f32.mrb[0].mxu0
      %v1234 = vadd.f32 %v1053, %v1233
      %v1235 = vpop.f32.mrb[0].mxu0
      %1236 = vmatprep.mubr.bf16.mxu0 0
      %1237 = vmatmul.mubr.bf16.gmra.mrb[0].mxu0 %v1117
      %v1238 = vpop.f32.mrb[0].mxu0
      %v1239 = vadd.f32 %v1053, %v1238
      %v1240 = vpop.f32.mrb[0].mxu0
      %v1241 = vpop.f32.mrb[0].mxu0
      %v1242 = vadd.f32 %v1053, %v1241
      %v1243 = vpop.f32.mrb[0].mxu0
      %1244 = vmatprep.mubr.bf16.mxu0 0
      %1245 = vmatmul.mubr.bf16.gmra.mrb[0].mxu0 %v1120
      %v1246 = vpop.f32.mrb[0].mxu0
      %v1247 = vadd.f32 %v1053, %v1246
      %v1248 = vpop.f32.mrb[0].mxu0
      %v1249 = vpop.f32.mrb[0].mxu0
      %v1250 = vadd.f32 %v1053, %v1249
      %v1251 = vpop.f32.mrb[0].mxu0
      %1252 = vmatprep.mubr.bf16.mxu0 0
      %1253 = vmatmul.mubr.bf16.gmra.mrb[0].mxu0 %v1123
      %v1254 = vpop.f32.mrb[0].mxu0
      %v1255 = vadd.f32 %v1053, %v1254
      %v1256 = vpop.f32.mrb[0].mxu0
      %v1257 = vpop.f32.mrb[0].mxu0
      %v1258 = vadd.f32 %v1053, %v1257
      %v1259 = vpop.f32.mrb[0].mxu0
      %1260 = vmatprep.mubr.bf16.mxu0 0
      %1261 = vmatmul.mubr.bf16.gmra.mrb[0].mxu0 %v1126
      %v1262 = vpop.f32.mrb[0].mxu0
      %v1263 = vadd.f32 %v1053, %v1262
      %v1264 = vpop.f32.mrb[0].mxu0
      %v1265 = vpop.f32.mrb[0].mxu0
      %v1266 = vadd.f32 %v1053, %v1265
      %v1267 = vpop.f32.mrb[0].mxu0
      %1268 = vmatprep.mubr.bf16.mxu0 0
      %1269 = vmatmul.mubr.bf16.gmra.mrb[0].mxu0 %v1129
      %v1270 = vpop.f32.mrb[0].mxu0
      %v1271 = vadd.f32 %v1053, %v1270
      %v1272 = vpop.f32.mrb[0].mxu0
      %v1273 = vpop.f32.mrb[0].mxu0
      %v1274 = vadd.f32 %v1053, %v1273
      %v1275 = vpop.f32.mrb[0].mxu0
      %1276 = vmatprep.mubr.bf16.mxu0 0
      %1277 = vmatmul.mubr.bf16.gmra.mrb[0].mxu0 %v1132
      %v1278 = vpop.f32.mrb[0].mxu0
      %v1279 = vadd.f32 %v1053, %v1278
      %v1280 = vpop.f32.mrb[0].mxu0
      %v1281 = vpop.f32.mrb[0].mxu0
      %v1282 = vadd.f32 %v1053, %v1281
      %v1283 = vpop.f32.mrb[0].mxu0
      %1284 = vmatprep.mubr.bf16.mxu0 0
      %1285 = vmatmul.mubr.bf16.gmra.mrb[0].mxu0 %v1135
      %v1286 = vpop.f32.mrb[0].mxu0
      %v1287 = vadd.f32 %v1053, %v1286
      %v1288 = vpop.f32.mrb[0].mxu0
      %v1289 = vpop.f32.mrb[0].mxu0
      %v1290 = vadd.f32 %v1053, %v1289
      %v1291 = vpop.f32.mrb[0].mxu0
      %1292 = vmatprep.mubr.bf16.mxu0 0
      %1293 = vmatmul.mubr.bf16.gmra.mrb[0].mxu0 %v1138
      %v1294 = vpop.f32.mrb[0].mxu0
      %v1295 = vadd.f32 %v1053, %v1294
      %v1296 = vpop.f32.mrb[0].mxu0
      %v1297 = vpop.f32.mrb[0].mxu0
      %v1298 = vadd.f32 %v1053, %v1297
      %v1299 = vpop.f32.mrb[0].mxu0
      %1300 = vdwg.mxu0
      %v1301 = vmax.f32 %v1175, 0.0
      %v1302 = vmax.f32 %v1178, 0.0
      %v1303 = vmax.f32 %v1183, 0.0
      %v1304 = vmax.f32 %v1186, 0.0
      %v1305 = vmax.f32 %v1191, 0.0
      %v1306 = vmax.f32 %v1194, 0.0
      %v1307 = vmax.f32 %v1199, 0.0
      %v1308 = vmax.f32 %v1202, 0.0
      %v1309 = vmax.f32 %v1207, 0.0
      %v1310 = vmax.f32 %v1210, 0.0
      %v1311 = vmax.f32 %v1215, 0.0
      %v1312 = vmax.f32 %v1218, 0.0
      %v1313 = vmax.f32 %v1223, 0.0
      %v1314 = vmax.f32 %v1226, 0.0
      %v1315 = vmax.f32 %v1231, 0.0
      %v1316 = vmax.f32 %v1234, 0.0
      %v1317 = vmax.f32 %v1239, 0.0
      %v1318 = vmax.f32 %v1242, 0.0
      %v1319 = vmax.f32 %v1247, 0.0
      %v1320 = vmax.f32 %v1250, 0.0
      %v1321 = vmax.f32 %v1255, 0.0
      %v1322 = vmax.f32 %v1258, 0.0
      %v1323 = vmax.f32 %v1263, 0.0
      %v1324 = vmax.f32 %v1266, 0.0
      %v1325 = vmax.f32 %v1271, 0.0
      %v1326 = vmax.f32 %v1274, 0.0
      %v1327 = vmax.f32 %v1279, 0.0
      %v1328 = vmax.f32 %v1282, 0.0
      %v1329 = vmax.f32 %v1287, 0.0
      %v1330 = vmax.f32 %v1290, 0.0
      %v1331 = vmax.f32 %v1295, 0.0
      %v1332 = vmax.f32 %v1298, 0.0
      %v1333 = vpack.c.bf16 %v1302, %v1301
      %v1334 = vpack.c.bf16 %v1304, %v1303
      %v1335 = vpack.c.bf16 %v1306, %v1305
      %v1336 = vpack.c.bf16 %v1308, %v1307
      %v1337 = vpack.c.bf16 %v1310, %v1309
      %v1338 = vpack.c.bf16 %v1312, %v1311
      %v1339 = vpack.c.bf16 %v1314, %v1313
      %v1340 = vpack.c.bf16 %v1316, %v1315
      %v1341 = vpack.c.bf16 %v1318, %v1317
      %v1342 = vpack.c.bf16 %v1320, %v1319
      %v1343 = vpack.c.bf16 %v1322, %v1321
      %v1344 = vpack.c.bf16 %v1324, %v1323
      %v1345 = vpack.c.bf16 %v1326, %v1325
      %v1346 = vpack.c.bf16 %v1328, %v1327
      %v1347 = vpack.c.bf16 %v1330, %v1329
      %v1348 = vpack.c.bf16 %v1332, %v1331
      %v1349 = vld [vmem:[%s7] sm:$0xf]
      %v1350 = vld [vmem:[%s7 + $0x4] sm:$0xf]
      %v1351 = vld [vmem:[%s7 + $0x8] sm:$0xf]
      %v1352 = vld [vmem:[%s7 + $0xc] sm:$0xf]
      %v1353 = vld [vmem:[%s7 + $0x10] sm:$0xf]
      %v1354 = vld [vmem:[%s7 + $0x14] sm:$0xf]
      %v1355 = vld [vmem:[%s7 + $0x18] sm:$0xf]
      %v1356 = vld [vmem:[%s7 + $0x1c] sm:$0xf]
      %v1357 = vld [vmem:[%s7 + $0x20] sm:$0xf]
      %v1358 = vld [vmem:[%s7 + $0x24] sm:$0xf]
      %v1359 = vld [vmem:[%s7 + $0x28] sm:$0xf]
      %v1360 = vld [vmem:[%s7 + $0x2c] sm:$0xf]
      %v1361 = vld [vmem:[%s8] sm:$0x1]
      %v1363 = vlaneseq
      %v1364 = vshrl.u32 %v1363, 7
      %v1365 = vsub.s32 0, %v1364
      %v1366 = vrot.slane %v1361, %v1365
      %v1380 = vunpack.c.l.b16 %v1349
      %v1381 = vunpack.c.l.b16 %v1350
      %v1382 = vunpack.c.l.b16 %v1351
      %v1383 = vunpack.c.l.b16 %v1352
      %v1384 = vunpack.c.l.b16 %v1353
      %v1385 = vunpack.c.l.b16 %v1354
      %v1386 = vunpack.c.l.b16 %v1355
      %v1387 = vunpack.c.l.b16 %v1356
      %v1388 = vunpack.c.l.b16 %v1357
      %v1389 = vunpack.c.l.b16 %v1358
      %v1390 = vunpack.c.l.b16 %v1359
      %v1391 = vunpack.c.l.b16 %v1360
      %v1392 = vpack.c.b16 %v1381, %v1380
      %v1393 = vpack.c.b16 %v1383, %v1382
      %v1394 = vpack.c.b16 %v1385, %v1384
      %v1395 = vpack.c.b16 %v1387, %v1386
      %v1396 = vpack.c.b16 %v1389, %v1388
      %v1397 = vpack.c.b16 %v1391, %v1390
      %v1405 = vsel %vm1091, %v1333, 0
      %v1408 = vsel %vm1091, %v1334, 0
      %v1411 = vsel %vm1091, %v1335, 0
      %v1414 = vsel %vm1091, %v1336, 0
      %v1417 = vsel %vm1091, %v1337, 0
      %v1420 = vsel %vm1091, %v1338, 0
      %v1423 = vsel %vm1091, %v1339, 0
      %v1426 = vsel %vm1091, %v1340, 0
      %v1429 = vsel %vm1091, %v1341, 0
      %v1432 = vsel %vm1091, %v1342, 0
      %v1435 = vsel %vm1091, %v1343, 0
      %v1438 = vsel %vm1091, %v1344, 0
      %v1441 = vsel %vm1091, %v1345, 0
      %v1444 = vsel %vm1091, %v1346, 0
      %v1447 = vsel %vm1091, %v1347, 0
      %v1450 = vsel %vm1091, %v1348, 0
      %1452 = vmatprep.subr.bf16.mxu0 0
      %1453 = vmatpush1.bf16.msra.mxu0 %v1392
      %1454 = vmatprep.subr.bf16.mxu0 0
      %1455 = vmatpush1.bf16.msra.mxu0 %v1393
      %1456 = vmatprep.subr.bf16.mxu0 0
      %1457 = vmatpush1.bf16.msra.mxu0 %v1394
      %1458 = vmatprep.subr.bf16.mxu0 0
      %1459 = vmatpush1.bf16.msra.mxu0 %v1395
      %1460 = vmatprep.subr.bf16.mxu0 0
      %1461 = vmatpush1.bf16.msra.mxu0 %v1396
      %1462 = vmatprep.subr.bf16.mxu0 0
      %1463 = vmatpush1.bf16.msra.mxu0 %v1397
      %1464 = vmatprep.subr.bf16.mxu0 0
      %1465 = vmatpush1.bf16.msra.mxu0 0
      %1466 = vmatprep.subr.bf16.mxu0 0
      %1467 = vmatpush1.bf16.msra.mxu0 0
      %1468 = vmatprep.subr.bf16.mxu0 0
      %1469 = vmatpush1.bf16.msra.mxu0 0
      %1470 = vmatprep.subr.bf16.mxu0 0
      %1471 = vmatpush1.bf16.msra.mxu0 0
      %1472 = vmatprep.subr.bf16.mxu0 0
      %1473 = vmatpush1.bf16.msra.mxu0 0
      %1474 = vmatprep.subr.bf16.mxu0 0
      %1475 = vmatpush1.bf16.msra.mxu0 0
      %1476 = vmatprep.subr.bf16.mxu0 0
      %1477 = vmatpush1.bf16.msra.mxu0 0
      %1478 = vmatprep.subr.bf16.mxu0 0
      %1479 = vmatpush1.bf16.msra.mxu0 0
      %1480 = vmatprep.subr.bf16.mxu0 0
      %1481 = vmatpush1.bf16.msra.mxu0 0
      %1482 = vmatprep.subr.bf16.mxu0 0
      %1483 = vmatpush1.bf16.msra.mxu0 0
      %1484 = vmatprep.mubr.bf16.mxu0 0
      %1485 = vmatmul.mubr.bf16.gmra.mrb[0].mxu0 %v1405
      %v1486 = vpop.f32.mrb[0].mxu0
      %v1487 = vadd.f32 %v1366, %v1486
      %v1488 = vpop.f32.mrb[0].mxu0
      %v1489 = vpop.f32.mrb[0].mxu0
      %v1490 = vadd.f32 %v1366, %v1489
      %v1491 = vpop.f32.mrb[0].mxu0
      %1492 = vmatprep.mubr.bf16.mxu0 0
      %1493 = vmatmul.mubr.bf16.gmra.mrb[0].mxu0 %v1408
      %v1494 = vpop.f32.mrb[0].mxu0
      %v1495 = vadd.f32 %v1366, %v1494
      %v1496 = vpop.f32.mrb[0].mxu0
      %v1497 = vpop.f32.mrb[0].mxu0
      %v1498 = vadd.f32 %v1366, %v1497
      %v1499 = vpop.f32.mrb[0].mxu0
      %1500 = vmatprep.mubr.bf16.mxu0 0
      %1501 = vmatmul.mubr.bf16.gmra.mrb[0].mxu0 %v1411
      %v1502 = vpop.f32.mrb[0].mxu0
      %v1503 = vadd.f32 %v1366, %v1502
      %v1504 = vpop.f32.mrb[0].mxu0
      %v1505 = vpop.f32.mrb[0].mxu0
      %v1506 = vadd.f32 %v1366, %v1505
      %v1507 = vpop.f32.mrb[0].mxu0
      %1508 = vmatprep.mubr.bf16.mxu0 0
      %1509 = vmatmul.mubr.bf16.gmra.mrb[0].mxu0 %v1414
      %v1510 = vpop.f32.mrb[0].mxu0
      %v1511 = vadd.f32 %v1366, %v1510
      %v1512 = vpop.f32.mrb[0].mxu0
      %v1513 = vpop.f32.mrb[0].mxu0
      %v1514 = vadd.f32 %v1366, %v1513
      %v1515 = vpop.f32.mrb[0].mxu0
      %1516 = vmatprep.mubr.bf16.mxu0 0
      %1517 = vmatmul.mubr.bf16.gmra.mrb[0].mxu0 %v1417
      %v1518 = vpop.f32.mrb[0].mxu0
      %v1519 = vadd.f32 %v1366, %v1518
      %v1520 = vpop.f32.mrb[0].mxu0
      %v1521 = vpop.f32.mrb[0].mxu0
      %v1522 = vadd.f32 %v1366, %v1521
      %v1523 = vpop.f32.mrb[0].mxu0
      %1524 = vmatprep.mubr.bf16.mxu0 0
      %1525 = vmatmul.mubr.bf16.gmra.mrb[0].mxu0 %v1420
      %v1526 = vpop.f32.mrb[0].mxu0
      %v1527 = vadd.f32 %v1366, %v1526
      %v1528 = vpop.f32.mrb[0].mxu0
      %v1529 = vpop.f32.mrb[0].mxu0
      %v1530 = vadd.f32 %v1366, %v1529
      %v1531 = vpop.f32.mrb[0].mxu0
      %1532 = vmatprep.mubr.bf16.mxu0 0
      %1533 = vmatmul.mubr.bf16.gmra.mrb[0].mxu0 %v1423
      %v1534 = vpop.f32.mrb[0].mxu0
      %v1535 = vadd.f32 %v1366, %v1534
      %v1536 = vpop.f32.mrb[0].mxu0
      %v1537 = vpop.f32.mrb[0].mxu0
      %v1538 = vadd.f32 %v1366, %v1537
      %v1539 = vpop.f32.mrb[0].mxu0
      %1540 = vmatprep.mubr.bf16.mxu0 0
      %1541 = vmatmul.mubr.bf16.gmra.mrb[0].mxu0 %v1426
      %v1542 = vpop.f32.mrb[0].mxu0
      %v1543 = vadd.f32 %v1366, %v1542
      %v1544 = vpop.f32.mrb[0].mxu0
      %v1545 = vpop.f32.mrb[0].mxu0
      %v1546 = vadd.f32 %v1366, %v1545
      %v1547 = vpop.f32.mrb[0].mxu0
      %1548 = vmatprep.mubr.bf16.mxu0 0
      %1549 = vmatmul.mubr.bf16.gmra.mrb[0].mxu0 %v1429
      %v1550 = vpop.f32.mrb[0].mxu0
      %v1551 = vadd.f32 %v1366, %v1550
      %v1552 = vpop.f32.mrb[0].mxu0
      %v1553 = vpop.f32.mrb[0].mxu0
      %v1554 = vadd.f32 %v1366, %v1553
      %v1555 = vpop.f32.mrb[0].mxu0
      %1556 = vmatprep.mubr.bf16.mxu0 0
      %1557 = vmatmul.mubr.bf16.gmra.mrb[0].mxu0 %v1432
      %v1558 = vpop.f32.mrb[0].mxu0
      %v1559 = vadd.f32 %v1366, %v1558
      %v1560 = vpop.f32.mrb[0].mxu0
      %v1561 = vpop.f32.mrb[0].mxu0
      %v1562 = vadd.f32 %v1366, %v1561
      %v1563 = vpop.f32.mrb[0].mxu0
      %1564 = vmatprep.mubr.bf16.mxu0 0
      %1565 = vmatmul.mubr.bf16.gmra.mrb[0].mxu0 %v1435
      %v1566 = vpop.f32.mrb[0].mxu0
      %v1567 = vadd.f32 %v1366, %v1566
      %v1568 = vpop.f32.mrb[0].mxu0
      %v1569 = vpop.f32.mrb[0].mxu0
      %v1570 = vadd.f32 %v1366, %v1569
      %v1571 = vpop.f32.mrb[0].mxu0
      %1572 = vmatprep.mubr.bf16.mxu0 0
      %1573 = vmatmul.mubr.bf16.gmra.mrb[0].mxu0 %v1438
      %v1574 = vpop.f32.mrb[0].mxu0
      %v1575 = vadd.f32 %v1366, %v1574
      %v1576 = vpop.f32.mrb[0].mxu0
      %v1577 = vpop.f32.mrb[0].mxu0
      %v1578 = vadd.f32 %v1366, %v1577
      %v1579 = vpop.f32.mrb[0].mxu0
      %1580 = vmatprep.mubr.bf16.mxu0 0
      %1581 = vmatmul.mubr.bf16.gmra.mrb[0].mxu0 %v1441
      %v1582 = vpop.f32.mrb[0].mxu0
      %v1583 = vadd.f32 %v1366, %v1582
      %v1584 = vpop.f32.mrb[0].mxu0
      %v1585 = vpop.f32.mrb[0].mxu0
      %v1586 = vadd.f32 %v1366, %v1585
      %v1587 = vpop.f32.mrb[0].mxu0
      %1588 = vmatprep.mubr.bf16.mxu0 0
      %1589 = vmatmul.mubr.bf16.gmra.mrb[0].mxu0 %v1444
      %v1590 = vpop.f32.mrb[0].mxu0
      %v1591 = vadd.f32 %v1366, %v1590
      %v1592 = vpop.f32.mrb[0].mxu0
      %v1593 = vpop.f32.mrb[0].mxu0
      %v1594 = vadd.f32 %v1366, %v1593
      %v1595 = vpop.f32.mrb[0].mxu0
      %1596 = vmatprep.mubr.bf16.mxu0 0
      %1597 = vmatmul.mubr.bf16.gmra.mrb[0].mxu0 %v1447
      %v1598 = vpop.f32.mrb[0].mxu0
      %v1599 = vadd.f32 %v1366, %v1598
      %v1600 = vpop.f32.mrb[0].mxu0
      %v1601 = vpop.f32.mrb[0].mxu0
      %v1602 = vadd.f32 %v1366, %v1601
      %v1603 = vpop.f32.mrb[0].mxu0
      %1604 = vmatprep.mubr.bf16.mxu0 0
      %1605 = vmatmul.mubr.bf16.gmra.mrb[0].mxu0 %v1450
      %v1606 = vpop.f32.mrb[0].mxu0
      %v1607 = vadd.f32 %v1366, %v1606
      %v1608 = vpop.f32.mrb[0].mxu0
      %v1609 = vpop.f32.mrb[0].mxu0
      %v1610 = vadd.f32 %v1366, %v1609
      %v1611 = vpop.f32.mrb[0].mxu0
      %1612 = vdwg.mxu0
      %v1613 = vmax.f32 %v1487, 0.0
      %v1614 = vmax.f32 %v1490, 0.0
      %v1615 = vmax.f32 %v1495, 0.0
      %v1616 = vmax.f32 %v1498, 0.0
      %v1617 = vmax.f32 %v1503, 0.0
      %v1618 = vmax.f32 %v1506, 0.0
      %v1619 = vmax.f32 %v1511, 0.0
      %v1620 = vmax.f32 %v1514, 0.0
      %v1621 = vmax.f32 %v1519, 0.0
      %v1622 = vmax.f32 %v1522, 0.0
      %v1623 = vmax.f32 %v1527, 0.0
      %v1624 = vmax.f32 %v1530, 0.0
      %v1625 = vmax.f32 %v1535, 0.0
      %v1626 = vmax.f32 %v1538, 0.0
      %v1627 = vmax.f32 %v1543, 0.0
      %v1628 = vmax.f32 %v1546, 0.0
      %v1629 = vmax.f32 %v1551, 0.0
      %v1630 = vmax.f32 %v1554, 0.0
      %v1631 = vmax.f32 %v1559, 0.0
      %v1632 = vmax.f32 %v1562, 0.0
      %v1633 = vmax.f32 %v1567, 0.0
      %v1634 = vmax.f32 %v1570, 0.0
      %v1635 = vmax.f32 %v1575, 0.0
      %v1636 = vmax.f32 %v1578, 0.0
      %v1637 = vmax.f32 %v1583, 0.0
      %v1638 = vmax.f32 %v1586, 0.0
      %v1639 = vmax.f32 %v1591, 0.0
      %v1640 = vmax.f32 %v1594, 0.0
      %v1641 = vmax.f32 %v1599, 0.0
      %v1642 = vmax.f32 %v1602, 0.0
      %v1643 = vmax.f32 %v1607, 0.0
      %v1644 = vmax.f32 %v1610, 0.0
      %v1645 = vpack.c.bf16 %v1614, %v1613
      %v1646 = vpack.c.bf16 %v1616, %v1615
      %v1647 = vpack.c.bf16 %v1618, %v1617
      %v1648 = vpack.c.bf16 %v1620, %v1619
      %v1649 = vpack.c.bf16 %v1622, %v1621
      %v1650 = vpack.c.bf16 %v1624, %v1623
      %v1651 = vpack.c.bf16 %v1626, %v1625
      %v1652 = vpack.c.bf16 %v1628, %v1627
      %v1653 = vpack.c.bf16 %v1630, %v1629
      %v1654 = vpack.c.bf16 %v1632, %v1631
      %v1655 = vpack.c.bf16 %v1634, %v1633
      %v1656 = vpack.c.bf16 %v1636, %v1635
      %v1657 = vpack.c.bf16 %v1638, %v1637
      %v1658 = vpack.c.bf16 %v1640, %v1639
      %v1659 = vpack.c.bf16 %v1642, %v1641
      %v1660 = vpack.c.bf16 %v1644, %v1643
      %v1661 = vld [vmem:[%s9] sm:$0xf]
      %v1662 = vld [vmem:[%s9 + $0x4] sm:$0xf]
      %v1663 = vld [vmem:[%s9 + $0x8] sm:$0xf]
      %v1664 = vld [vmem:[%s9 + $0xc] sm:$0xf]
      %v1665 = vld [vmem:[%s9 + $0x10] sm:$0xf]
      %v1666 = vld [vmem:[%s9 + $0x14] sm:$0xf]
      %v1667 = vld [vmem:[%s9 + $0x18] sm:$0xf]
      %v1668 = vld [vmem:[%s9 + $0x1c] sm:$0xf]
      %v1669 = vld [vmem:[%s10] sm:$0x1]
      %v1671 = vlaneseq
      %v1672 = vshrl.u32 %v1671, 7
      %v1673 = vsub.s32 0, %v1672
      %v1674 = vrot.slane %v1669, %v1673
      %v1684 = vunpack.c.l.b16 %v1661
      %v1685 = vunpack.c.l.b16 %v1662
      %v1686 = vunpack.c.l.b16 %v1663
      %v1687 = vunpack.c.l.b16 %v1664
      %v1688 = vunpack.c.l.b16 %v1665
      %v1689 = vunpack.c.l.b16 %v1666
      %v1690 = vunpack.c.l.b16 %v1667
      %v1691 = vunpack.c.l.b16 %v1668
      %v1692 = vpack.c.b16 %v1685, %v1684
      %v1693 = vpack.c.b16 %v1687, %v1686
      %v1694 = vpack.c.b16 %v1689, %v1688
      %v1695 = vpack.c.b16 %v1691, %v1690
      %vm1700 = vcmask 523264
      %v1702 = vsel %vm1700, %v1645, 0
      %v1705 = vsel %vm1700, %v1646, 0
      %v1708 = vsel %vm1700, %v1647, 0
      %v1711 = vsel %vm1700, %v1648, 0
      %v1714 = vsel %vm1700, %v1649, 0
      %v1717 = vsel %vm1700, %v1650, 0
      %v1720 = vsel %vm1700, %v1651, 0
      %v1723 = vsel %vm1700, %v1652, 0
      %v1726 = vsel %vm1700, %v1653, 0
      %v1729 = vsel %vm1700, %v1654, 0
      %v1732 = vsel %vm1700, %v1655, 0
      %v1735 = vsel %vm1700, %v1656, 0
      %v1738 = vsel %vm1700, %v1657, 0
      %v1741 = vsel %vm1700, %v1658, 0
      %v1744 = vsel %vm1700, %v1659, 0
      %v1747 = vsel %vm1700, %v1660, 0
      %1749 = vmatprep.subr.bf16.mxu0 0
      %1750 = vmatpush1.bf16.msra.mxu0 %v1692
      %1751 = vmatprep.subr.bf16.mxu0 0
      %1752 = vmatpush1.bf16.msra.mxu0 %v1693
      %1753 = vmatprep.subr.bf16.mxu0 0
      %1754 = vmatpush1.bf16.msra.mxu0 %v1694
      %1755 = vmatprep.subr.bf16.mxu0 0
      %1756 = vmatpush1.bf16.msra.mxu0 %v1695
      %1757 = vmatprep.subr.bf16.mxu0 0
      %1758 = vmatpush1.bf16.msra.mxu0 0
      %1759 = vmatprep.subr.bf16.mxu0 0
      %1760 = vmatpush1.bf16.msra.mxu0 0
      %1761 = vmatprep.subr.bf16.mxu0 0
      %1762 = vmatpush1.bf16.msra.mxu0 0
      %1763 = vmatprep.subr.bf16.mxu0 0
      %1764 = vmatpush1.bf16.msra.mxu0 0
      %1765 = vmatprep.subr.bf16.mxu0 0
      %1766 = vmatpush1.bf16.msra.mxu0 0
      %1767 = vmatprep.subr.bf16.mxu0 0
      %1768 = vmatpush1.bf16.msra.mxu0 0
      %1769 = vmatprep.subr.bf16.mxu0 0
      %1770 = vmatpush1.bf16.msra.mxu0 0
      %1771 = vmatprep.subr.bf16.mxu0 0
      %1772 = vmatpush1.bf16.msra.mxu0 0
      %1773 = vmatprep.subr.bf16.mxu0 0
      %1774 = vmatpush1.bf16.msra.mxu0 0
      %1775 = vmatprep.subr.bf16.mxu0 0
      %1776 = vmatpush1.bf16.msra.mxu0 0
      %1777 = vmatprep.subr.bf16.mxu0 0
      %1778 = vmatpush1.bf16.msra.mxu0 0
      %1779 = vmatprep.subr.bf16.mxu0 0
      %1780 = vmatpush1.bf16.msra.mxu0 0
      %1781 = vmatprep.mubr.bf16.mxu0 0
      %1782 = vmatmul.mubr.bf16.gmra.mrb[0].mxu0 %v1702
      %v1783 = vpop.f32.mrb[0].mxu0
      %v1784 = vadd.f32 %v1674, %v1783
      %v1785 = vpop.f32.mrb[0].mxu0
      %v1786 = vpop.f32.mrb[0].mxu0
      %v1787 = vadd.f32 %v1674, %v1786
      %v1788 = vpop.f32.mrb[0].mxu0
      %1789 = vmatprep.mubr.bf16.mxu0 0
      %1790 = vmatmul.mubr.bf16.gmra.mrb[0].mxu0 %v1705
      %v1791 = vpop.f32.mrb[0].mxu0
      %v1792 = vadd.f32 %v1674, %v1791
      %v1793 = vpop.f32.mrb[0].mxu0
      %v1794 = vpop.f32.mrb[0].mxu0
      %v1795 = vadd.f32 %v1674, %v1794
      %v1796 = vpop.f32.mrb[0].mxu0
      %1797 = vmatprep.mubr.bf16.mxu0 0
      %1798 = vmatmul.mubr.bf16.gmra.mrb[0].mxu0 %v1708
      %v1799 = vpop.f32.mrb[0].mxu0
      %v1800 = vadd.f32 %v1674, %v1799
      %v1801 = vpop.f32.mrb[0].mxu0
      %v1802 = vpop.f32.mrb[0].mxu0
      %v1803 = vadd.f32 %v1674, %v1802
      %v1804 = vpop.f32.mrb[0].mxu0
      %1805 = vmatprep.mubr.bf16.mxu0 0
      %1806 = vmatmul.mubr.bf16.gmra.mrb[0].mxu0 %v1711
      %v1807 = vpop.f32.mrb[0].mxu0
      %v1808 = vadd.f32 %v1674, %v1807
      %v1809 = vpop.f32.mrb[0].mxu0
      %v1810 = vpop.f32.mrb[0].mxu0
      %v1811 = vadd.f32 %v1674, %v1810
      %v1812 = vpop.f32.mrb[0].mxu0
      %1813 = vmatprep.mubr.bf16.mxu0 0
      %1814 = vmatmul.mubr.bf16.gmra.mrb[0].mxu0 %v1714
      %v1815 = vpop.f32.mrb[0].mxu0
      %v1816 = vadd.f32 %v1674, %v1815
      %v1817 = vpop.f32.mrb[0].mxu0
      %v1818 = vpop.f32.mrb[0].mxu0
      %v1819 = vadd.f32 %v1674, %v1818
      %v1820 = vpop.f32.mrb[0].mxu0
      %1821 = vmatprep.mubr.bf16.mxu0 0
      %1822 = vmatmul.mubr.bf16.gmra.mrb[0].mxu0 %v1717
      %v1823 = vpop.f32.mrb[0].mxu0
      %v1824 = vadd.f32 %v1674, %v1823
      %v1825 = vpop.f32.mrb[0].mxu0
      %v1826 = vpop.f32.mrb[0].mxu0
      %v1827 = vadd.f32 %v1674, %v1826
      %v1828 = vpop.f32.mrb[0].mxu0
      %1829 = vmatprep.mubr.bf16.mxu0 0
      %1830 = vmatmul.mubr.bf16.gmra.mrb[0].mxu0 %v1720
      %v1831 = vpop.f32.mrb[0].mxu0
      %v1832 = vadd.f32 %v1674, %v1831
      %v1833 = vpop.f32.mrb[0].mxu0
      %v1834 = vpop.f32.mrb[0].mxu0
      %v1835 = vadd.f32 %v1674, %v1834
      %v1836 = vpop.f32.mrb[0].mxu0
      %1837 = vmatprep.mubr.bf16.mxu0 0
      %1838 = vmatmul.mubr.bf16.gmra.mrb[0].mxu0 %v1723
      %v1839 = vpop.f32.mrb[0].mxu0
      %v1840 = vadd.f32 %v1674, %v1839
      %v1841 = vpop.f32.mrb[0].mxu0
      %v1842 = vpop.f32.mrb[0].mxu0
      %v1843 = vadd.f32 %v1674, %v1842
      %v1844 = vpop.f32.mrb[0].mxu0
      %1845 = vmatprep.mubr.bf16.mxu0 0
      %1846 = vmatmul.mubr.bf16.gmra.mrb[0].mxu0 %v1726
      %v1847 = vpop.f32.mrb[0].mxu0
      %v1848 = vadd.f32 %v1674, %v1847
      %v1849 = vpop.f32.mrb[0].mxu0
      %v1850 = vpop.f32.mrb[0].mxu0
      %v1851 = vadd.f32 %v1674, %v1850
      %v1852 = vpop.f32.mrb[0].mxu0
      %1853 = vmatprep.mubr.bf16.mxu0 0
      %1854 = vmatmul.mubr.bf16.gmra.mrb[0].mxu0 %v1729
      %v1855 = vpop.f32.mrb[0].mxu0
      %v1856 = vadd.f32 %v1674, %v1855
      %v1857 = vpop.f32.mrb[0].mxu0
      %v1858 = vpop.f32.mrb[0].mxu0
      %v1859 = vadd.f32 %v1674, %v1858
      %v1860 = vpop.f32.mrb[0].mxu0
      %1861 = vmatprep.mubr.bf16.mxu0 0
      %1862 = vmatmul.mubr.bf16.gmra.mrb[0].mxu0 %v1732
      %v1863 = vpop.f32.mrb[0].mxu0
      %v1864 = vadd.f32 %v1674, %v1863
      %v1865 = vpop.f32.mrb[0].mxu0
      %v1866 = vpop.f32.mrb[0].mxu0
      %v1867 = vadd.f32 %v1674, %v1866
      %v1868 = vpop.f32.mrb[0].mxu0
      %1869 = vmatprep.mubr.bf16.mxu0 0
      %1870 = vmatmul.mubr.bf16.gmra.mrb[0].mxu0 %v1735
      %v1871 = vpop.f32.mrb[0].mxu0
      %v1872 = vadd.f32 %v1674, %v1871
      %v1873 = vpop.f32.mrb[0].mxu0
      %v1874 = vpop.f32.mrb[0].mxu0
      %v1875 = vadd.f32 %v1674, %v1874
      %v1876 = vpop.f32.mrb[0].mxu0
      %1877 = vmatprep.mubr.bf16.mxu0 0
      %1878 = vmatmul.mubr.bf16.gmra.mrb[0].mxu0 %v1738
      %v1879 = vpop.f32.mrb[0].mxu0
      %v1880 = vadd.f32 %v1674, %v1879
      %v1881 = vpop.f32.mrb[0].mxu0
      %v1882 = vpop.f32.mrb[0].mxu0
      %v1883 = vadd.f32 %v1674, %v1882
      %v1884 = vpop.f32.mrb[0].mxu0
      %1885 = vmatprep.mubr.bf16.mxu0 0
      %1886 = vmatmul.mubr.bf16.gmra.mrb[0].mxu0 %v1741
      %v1887 = vpop.f32.mrb[0].mxu0
      %v1888 = vadd.f32 %v1674, %v1887
      %v1889 = vpop.f32.mrb[0].mxu0
      %v1890 = vpop.f32.mrb[0].mxu0
      %v1891 = vadd.f32 %v1674, %v1890
      %v1892 = vpop.f32.mrb[0].mxu0
      %1893 = vmatprep.mubr.bf16.mxu0 0
      %1894 = vmatmul.mubr.bf16.gmra.mrb[0].mxu0 %v1744
      %v1895 = vpop.f32.mrb[0].mxu0
      %v1896 = vadd.f32 %v1674, %v1895
      %v1897 = vpop.f32.mrb[0].mxu0
      %v1898 = vpop.f32.mrb[0].mxu0
      %v1899 = vadd.f32 %v1674, %v1898
      %v1900 = vpop.f32.mrb[0].mxu0
      %1901 = vmatprep.mubr.bf16.mxu0 0
      %1902 = vmatmul.mubr.bf16.gmra.mrb[0].mxu0 %v1747
      %v1903 = vpop.f32.mrb[0].mxu0
      %v1904 = vadd.f32 %v1674, %v1903
      %v1905 = vpop.f32.mrb[0].mxu0
      %v1906 = vpop.f32.mrb[0].mxu0
      %v1907 = vadd.f32 %v1674, %v1906
      %v1908 = vpop.f32.mrb[0].mxu0
      %1909 = vdwg.mxu0
      %vm1910 = vcmask 15360
      %1911 = vst.msk [vmem:[%s410] sm:$0xff] %vm1910, %v1784
      %1912 = vst.msk [vmem:[%s410 + $0x8] sm:$0xff] %vm1910, %v1787
      %1913 = vst.msk [vmem:[%s410 + $0x10] sm:$0xff] %vm1910, %v1792
      %1914 = vst.msk [vmem:[%s410 + $0x18] sm:$0xff] %vm1910, %v1795
      %1915 = vst.msk [vmem:[%s410 + $0x20] sm:$0xff] %vm1910, %v1800
      %1916 = vst.msk [vmem:[%s410 + $0x28] sm:$0xff] %vm1910, %v1803
      %1917 = vst.msk [vmem:[%s410 + $0x30] sm:$0xff] %vm1910, %v1808
      %1918 = vst.msk [vmem:[%s410 + $0x38] sm:$0xff] %vm1910, %v1811
      %1919 = vst.msk [vmem:[%s410 + $0x40] sm:$0xff] %vm1910, %v1816
      %1920 = vst.msk [vmem:[%s410 + $0x48] sm:$0xff] %vm1910, %v1819
      %1921 = vst.msk [vmem:[%s410 + $0x50] sm:$0xff] %vm1910, %v1824
      %1922 = vst.msk [vmem:[%s410 + $0x58] sm:$0xff] %vm1910, %v1827
      %1923 = vst.msk [vmem:[%s410 + $0x60] sm:$0xff] %vm1910, %v1832
      %1924 = vst.msk [vmem:[%s410 + $0x68] sm:$0xff] %vm1910, %v1835
      %1925 = vst.msk [vmem:[%s410 + $0x70] sm:$0xff] %vm1910, %v1840
      %1926 = vst.msk [vmem:[%s410 + $0x78] sm:$0xff] %vm1910, %v1843
      %1927 = vst.msk [vmem:[%s410 + $0x80] sm:$0xff] %vm1910, %v1848
      %1928 = vst.msk [vmem:[%s410 + $0x88] sm:$0xff] %vm1910, %v1851
      %1929 = vst.msk [vmem:[%s410 + $0x90] sm:$0xff] %vm1910, %v1856
      %1930 = vst.msk [vmem:[%s410 + $0x98] sm:$0xff] %vm1910, %v1859
      %1931 = vst.msk [vmem:[%s410 + $0xa0] sm:$0xff] %vm1910, %v1864
      %1932 = vst.msk [vmem:[%s410 + $0xa8] sm:$0xff] %vm1910, %v1867
      %1933 = vst.msk [vmem:[%s410 + $0xb0] sm:$0xff] %vm1910, %v1872
      %1934 = vst.msk [vmem:[%s410 + $0xb8] sm:$0xff] %vm1910, %v1875
      %1935 = vst.msk [vmem:[%s410 + $0xc0] sm:$0xff] %vm1910, %v1880
      %1936 = vst.msk [vmem:[%s410 + $0xc8] sm:$0xff] %vm1910, %v1883
      %1937 = vst.msk [vmem:[%s410 + $0xd0] sm:$0xff] %vm1910, %v1888
      %1938 = vst.msk [vmem:[%s410 + $0xd8] sm:$0xff] %vm1910, %v1891
      %1939 = vst.msk [vmem:[%s410 + $0xe0] sm:$0xff] %vm1910, %v1896
      %1940 = vst.msk [vmem:[%s410 + $0xe8] sm:$0xff] %vm1910, %v1899
      %1941 = vst.msk [vmem:[%s410 + $0xf0] sm:$0xff] %vm1910, %v1904
      %1942 = vst.msk [vmem:[%s410 + $0xf8] sm:$0xff] %vm1910, %v1907
      %s1943 = smul.u32 32, %s22
      %p1944 = scmp.lt.s32.totalorder %s1943, 63
      %s1945 = scalar_select %p1944, %s1943, 63
      %s1946 = smul.addr %s1945, 8
      %s1947 = scalar_lea.vmem %s11, %s1946
      // Predicated region
      $region65: #{tpu_custom_call.1} parent=63 // pred_check
        %p1948 = pneg %p281
      $region66: #{tpu_custom_call.1} parent=63 // pred_check_branch
        %1950 = sbr.rel (%p1948) target = $region68
      $region67: #{tpu_custom_call.1} parent=63 // pred_region
        %s1951 = smul.u32 32, %s22
      $region68: #{tpu_custom_call.1} parent=63 // pred_fallthru
        _
    $region64: #{tpu_custom_call.1} parent=5 // pred_fallthru
      _
    %p1952 = scmp.le.s32.totalorder 2, %s17
    // Predicated region
    $region69: #{tpu_custom_call.1} parent=5 // pred_check
      %p1953 = pneg %p1952
    $region70: #{tpu_custom_call.1} parent=5 // pred_check_branch
      %1955 = sbr.rel (%p1953) target = $region72
    $region71: #{tpu_custom_call.1} parent=5 // pred_region
      %s1956 = ssub.s32 %s17, 2
      // Predicated region
      $region73: #{tpu_custom_call.1} parent=71 // pred_check
        %p1957 = pneg %p287
      $region74: #{tpu_custom_call.1} parent=71 // pred_check_branch
        %1959 = sbr.rel (%p1957) target = $region76
      $region75: #{tpu_custom_call.1} parent=71 // pred_region
        %s1960 = smul.u32 32, %s23
        %p1961 = scmp.lt.s32.totalorder %s1960, 63
        %s1962 = scalar_select %p1961, %s1960, 63
        %s1963 = smul.addr %s1962, 8
        %s1964 = scalar_lea.vmem %s11, %s1963
      $region76: #{tpu_custom_call.1} parent=71 // pred_fallthru
        _
    $region72: #{tpu_custom_call.1} parent=5 // pred_fallthru
      _
  $region6: #{tpu_custom_call.1} parent=0 // loop_footer
    %s21 = sadd.s32 1, %s17
  $region7: #{tpu_custom_call.1} parent=0 // loop_footer_branch
    %16 = sbr.rel target = $region3
  $region8: #{tpu_custom_call.1} parent=0 // loop_exit
    _

</llo_original>
